<compile_context>
chip_gen: v5e
topology: v5e:2x2
jax: 0.10.0
libtpu: 0.0.40
codegen_flags: <defaults>
</compile_context>

<pallas_src>
import functools

import jax
import jax.numpy as jnp
from jax import lax
from jax.experimental import pallas as pl
from jax.experimental.pallas import tpu as pltpu

EPS = 1e-5                 # nn.BatchNorm2d default eps
NEG_SLOPE = 0.1            # nn.LeakyReLU(0.1)
LANE = 128
MXU_DTYPE = jnp.bfloat16   # MXU inputs; accumulation / BN math in f32


def _round_up(x, m):
    return (x + m - 1) // m * m


def _vmem_capacity_bytes():
    try:
        return int(getattr(pltpu.get_tpu_info(), "vmem_capacity_bytes"))
    except Exception:
        return 64 * 1024 * 1024          # conservative (v7x-sized) fallback


def _pick_tiles(M, K, Cout, out_bytes):
    """Pad sizes, pass-2 strategy, M tile and VMEM request for this chip."""
    Kp = _round_up(K, LANE)
    Cp = _round_up(Cout, LANE)
    write_y = Kp > 2 * Cp                # bf16-y writeback vs GEMM recompute

    vmem_cap = _vmem_capacity_bytes()
    w_bytes = 2 * Kp * Cp * 2            # resident weights (double-buffered)
    vmem_limit = int(min(vmem_cap * 0.85,
                         max(vmem_cap // 2, w_bytes + (16 << 20))))

    budget = int(vmem_limit * 0.8) - w_bytes - 2 * 2 * Cp * 4 - (256 << 10)
    # worst-pass per-M-row cost: dbl-buffered patches + dbl-buffered output
    # (+ bf16 y block on the writeback path)
    per_row = 2 * Kp * 2 + 2 * Cp * out_bytes + (2 * Cp * 2 if write_y else 0)
    tm = budget // per_row if budget > 0 else 8
    tm = max(8, min(tm, 2048))
    tm = (tm // 256 * 256) if tm >= 256 else (tm // 8 * 8)
    tm = max(8, min(tm, _round_up(M, 8)))
    return tm, Kp, Cp, write_y, vmem_limit


# ------------------------------- kernels ------------------------------------

def _gemm_stats_kernel(p_ref, w_ref, stats_ref):
    """Conv GEMM tile -> per-channel partial (sum, sum-of-squares)."""
    y = jnp.dot(p_ref[...], w_ref[...], preferred_element_type=jnp.float32)
    stats_ref[0:1, :] = jnp.sum(y, axis=0, keepdims=True)
    stats_ref[1:2, :] = jnp.sum(y * y, axis=0, keepdims=True)


def _gemm_y_stats_kernel(p_ref, w_ref, y_ref, stats_ref):
    """Conv GEMM tile -> bf16 y tile + per-channel partial stats."""
    y = jnp.dot(p_ref[...], w_ref[...], preferred_element_type=jnp.float32)
    y_ref[...] = y.astype(y_ref.dtype)
    stats_ref[0:1, :] = jnp.sum(y, axis=0, keepdims=True)
    stats_ref[1:2, :] = jnp.sum(y * y, axis=0, keepdims=True)


def _gemm_bn_act_kernel(p_ref, w_ref, sb_ref, out_ref):
    """Conv GEMM recompute + folded BatchNorm (one FMA) + LeakyReLU(0.1)."""
    y = jnp.dot(p_ref[...], w_ref[...], preferred_element_type=jnp.float32)
    z = y * sb_ref[0:1, :] + sb_ref[1:2, :]
    out_ref[...] = jnp.maximum(z, NEG_SLOPE * z).astype(out_ref.dtype)


def _bn_act_kernel(y_ref, sb_ref, out_ref):
    """Elementwise folded BatchNorm + LeakyReLU over the bf16 conv output."""
    z = y_ref[...].astype(jnp.float32) * sb_ref[0:1, :] + sb_ref[1:2, :]
    out_ref[...] = jnp.maximum(z, NEG_SLOPE * z).astype(out_ref.dtype)


# ------------------------------- glue ----------------------------------------

def _im2col(x, kh, kw, stride, padding):
    """NCHW f32 -> bf16 patches [N*OH*OW, kh*kw*Cin] (Cin fastest / lane-dense)."""
    # TODO(synk): fuse implicit im2col into the kernel (overlapping-window DMA
    # of the padded NHWC input) to remove the kh*kw HBM read amplification.
    N, C, H, W = x.shape
    xb = jnp.transpose(x.astype(MXU_DTYPE), (0, 2, 3, 1))            # bf16 NHWC
    xp = jnp.pad(xb, ((0, 0), (padding, padding), (padding, padding), (0, 0)))
    OH = (H + 2 * padding - kh) // stride + 1
    OW = (W + 2 * padding - kw) // stride + 1
    cols = [xp[:, i:i + stride * OH:stride, j:j + stride * OW:stride, :]
            for i in range(kh) for j in range(kw)]
    p = jnp.stack(cols, axis=3)                                       # [N,OH,OW,kh*kw,C]
    return p.reshape(N * OH * OW, kh * kw * C), OH, OW


@functools.partial(jax.jit, static_argnames=("stride", "padding", "tile_m",
                                              "out_dtype", "channels_last"))
def cnn_block(x, weight, gamma, beta, *, stride=1, padding=1, tile_m=None,
              out_dtype=None, channels_last=False):
    """CNNBlock(use_batch_norm=True) forward.  x: [N, Cin, H, W] float32."""
    N, Cin, H, W = x.shape
    Cout, _, KH, KW = weight.shape
    out_dtype = jnp.dtype(out_dtype or x.dtype)

    patches, OH, OW = _im2col(x, KH, KW, stride, padding)
    M, K = patches.shape

    TM, Kp, Cp, write_y, vmem_limit = _pick_tiles(M, K, Cout, out_dtype.itemsize)
    if tile_m is not None:                                  # test / tuning hook
        TM = max(8, min(_round_up(tile_m, 8), _round_up(M, 8)))
    Mp = _round_up(M, TM)
    Gm = Mp // TM

    # Lane/sublane-dense, zero-padded operands (zero rows/cols add 0 to the
    # GEMM and 0 to the BN sums; padding is sliced off at the end).
    patches_p = jnp.pad(patches, ((0, Mp - M), (0, Kp - K)))
    w_mat = jnp.transpose(weight, (2, 3, 1, 0)).reshape(K, Cout)   # [kh*kw*Cin, Cout]
    w_p = jnp.pad(w_mat.astype(MXU_DTYPE), ((0, Kp - K), (0, Cp - Cout)))

    cparams = pltpu.CompilerParams(
        dimension_semantics=("parallel",),      # megacore over the M axis
        vmem_limit_bytes=vmem_limit)

    gemm_flops = 2 * Mp * Kp * Cp
    patch_bytes = Mp * Kp * 2
    w_bytes = Kp * Cp * 2

    p_spec = pl.BlockSpec((TM, Kp), lambda i: (i, 0))
    w_spec = pl.BlockSpec((Kp, Cp), lambda i: (0, 0))       # DMA'd once, VMEM-resident
    sb_spec = pl.BlockSpec((2, Cp), lambda i: (0, 0))       # DMA'd once, VMEM-resident
    tile_spec = pl.BlockSpec((TM, Cp), lambda i: (i, 0))
    stats_spec = pl.BlockSpec((None, 2, Cp), lambda i: (i, 0, 0))
    stats_shape = jax.ShapeDtypeStruct((Gm, 2, Cp), jnp.float32)

    # ---- pass 1: conv GEMM + per-M-tile partial BatchNorm statistics --------
    if write_y:
        y, stats = pl.pallas_call(
            _gemm_y_stats_kernel,
            out_shape=(jax.ShapeDtypeStruct((Mp, Cp), MXU_DTYPE), stats_shape),
            grid_spec=pltpu.PrefetchScalarGridSpec(
                num_scalar_prefetch=0, grid=(Gm,),
                in_specs=[p_spec, w_spec],
                out_specs=[tile_spec, stats_spec]),
            compiler_params=cparams,
            cost_estimate=pl.CostEstimate(
                flops=gemm_flops, transcendentals=0,
                bytes_accessed=patch_bytes + w_bytes + Mp * Cp * 2
                + Gm * 2 * Cp * 4),
        )(patches_p, w_p)
    else:
        stats = pl.pallas_call(
            _gemm_stats_kernel,
            out_shape=stats_shape,
            grid_spec=pltpu.PrefetchScalarGridSpec(
                num_scalar_prefetch=0, grid=(Gm,),
                in_specs=[p_spec, w_spec],
                out_specs=stats_spec),
            compiler_params=cparams,
            cost_estimate=pl.CostEstimate(
                flops=gemm_flops, transcendentals=0,
                bytes_accessed=patch_bytes + w_bytes + Gm * 2 * Cp * 4),
        )(patches_p, w_p)

    # ---- fold BatchNorm into one per-channel (scale, shift) pair (tiny) -----
    # TODO(synk): for very large M, E[y^2]-E[y]^2 in f32 can cancel badly when
    # |mean| >> std; switch to a centered/compensated variance if needed.
    tot = jnp.sum(stats, axis=0)                           # (2, Cp)
    mean = tot[0] / M                                      # true M (pad rows give 0)
    var = jnp.maximum(tot[1] / M - mean * mean, 0.0)       # biased (train-mode) var
    gamma_p = jnp.pad(gamma.astype(jnp.float32), (0, Cp - Cout))
    beta_p = jnp.pad(beta.astype(jnp.float32), (0, Cp - Cout))
    scale = gamma_p * lax.rsqrt(var + EPS)
    shift = beta_p - mean * scale
    sb = jnp.stack([scale, shift], axis=0)                 # (2, Cp) resident block

    # ---- pass 2: BN + LeakyReLU (elementwise over bf16 y, or GEMM recompute) -
    out_shape = jax.ShapeDtypeStruct((Mp, Cp), out_dtype)
    if write_y:
        out = pl.pallas_call(
            _bn_act_kernel,
            out_shape=out_shape,
            grid_spec=pltpu.PrefetchScalarGridSpec(
                num_scalar_prefetch=0, grid=(Gm,),
                in_specs=[tile_spec, sb_spec],
                out_specs=tile_spec),
            compiler_params=cparams,
            cost_estimate=pl.CostEstimate(
                flops=3 * Mp * Cp, transcendentals=0,
                bytes_accessed=Mp * Cp * 2 + Mp * Cp * out_dtype.itemsize),
        )(y, sb)
    else:
        out = pl.pallas_call(
            _gemm_bn_act_kernel,
            out_shape=out_shape,
            grid_spec=pltpu.PrefetchScalarGridSpec(
                num_scalar_prefetch=0, grid=(Gm,),
                in_specs=[p_spec, w_spec, sb_spec],
                out_specs=tile_spec),
            compiler_params=cparams,
            cost_estimate=pl.CostEstimate(
                flops=gemm_flops, transcendentals=0,
                bytes_accessed=patch_bytes + w_bytes
                + Mp * Cp * out_dtype.itemsize),
        )(patches_p, w_p, sb)

    out = out[:M, :Cout].reshape(N, OH, OW, Cout)
    if channels_last:
        return out                                  # NHWC (for chained blocks)
    return jnp.transpose(out, (0, 3, 1, 2))         # PyTorch NCHW semantics


# ------------------------------- reference -----------------------------------

def _reference(x, weight, gamma, beta, *, stride=1, padding=1):
    """Plain-JAX reference (same bf16-input / f32-accumulate conv)."""
    y = lax.conv_general_dilated(
        x.astype(MXU_DTYPE), weight.astype(MXU_DTYPE),
        window_strides=(stride, stride),
        padding=[(padding, padding), (padding, padding)],
        dimension_numbers=("NCHW", "OIHW", "NCHW"),
        preferred_element_type=jnp.float32)
    mean = jnp.mean(y, axis=(0, 2, 3), keepdims=True)
    var = jnp.mean((y - mean) ** 2, axis=(0, 2, 3), keepdims=True)
    z = gamma.reshape(1, -1, 1, 1) * (y - mean) * lax.rsqrt(var + EPS) \
        + beta.reshape(1, -1, 1, 1)
    return jnp.where(z > 0, z, NEG_SLOPE * z)


if __name__ == "__main__":
    key = jax.random.PRNGKey(0)
    kx, kw, kg, kb = jax.random.split(key, 4)

    # ---- main config (module-spec shapes): small-K GEMM-recompute path ------
    N, Cin, H, W = 2, 4, 16, 16
    Cout, KH, KW = 8, 3, 3
    x = jax.random.normal(kx, (N, Cin, H, W), dtype=jnp.float32)
    weight = 0.1 * jax.random.normal(kw, (Cout, Cin, KH, KW), dtype=jnp.float32)
    gamma = jnp.ones((Cout,), dtype=jnp.float32)     # BatchNorm2d default init
    beta = jnp.zeros((Cout,), dtype=jnp.float32)
    # TODO(synk): BatchNorm running_mean/var buffer updates (training-time side
    # effect) are not part of the forward output and are not modeled here.

    out = jax.block_until_ready(cnn_block(x, weight, gamma, beta))
    ref = _reference(x, weight, gamma, beta)
    assert out.shape == (N, Cout, H, W)
    assert jnp.allclose(out, ref, atol=5e-3, rtol=5e-3), "mismatch (recompute path)"

    # ---- multi-M-tile recompute path (forced small TM -> Gm > 1) ------------
    out_b = jax.block_until_ready(cnn_block(x, weight, gamma, beta, tile_m=128))
    assert jnp.allclose(out_b, ref, atol=5e-3, rtol=5e-3), "mismatch (Gm>1 recompute)"

    # ---- large-K config: bf16-y writeback path (Kp > 2*Cp), Gm > 1 ----------
    N2, C2, H2, W2, Co2 = 1, 64, 8, 8, 256
    x2 = jax.random.normal(kx, (N2, C2, H2, W2), dtype=jnp.float32)
    w2 = 0.05 * jax.random.normal(kw, (Co2, C2, KH, KW), dtype=jnp.float32)
    g2 = 1.0 + 0.1 * jax.random.normal(kg, (Co2,), dtype=jnp.float32)
    b2 = 0.1 * jax.random.normal(kb, (Co2,), dtype=jnp.float32)
    out2 = jax.block_until_ready(cnn_block(x2, w2, g2, b2, tile_m=32))
    ref2 = _reference(x2, w2, g2, b2)
    assert out2.shape == (N2, Co2, H2, W2)
    assert jnp.allclose(out2, ref2, atol=1e-2, rtol=1e-2), "mismatch (y-writeback path)"

    print("KERNEL_OK")
</pallas_src>

<mosaic_0001>
module attributes {stable_mosaic.version = 11 : i64} {
  func.func @_gemm_stats_kernel(%arg0: i32, %arg1: memref<512x128xbf16, #tpu.memory_space<vmem>>, %arg2: memref<128x128xbf16, #tpu.memory_space<vmem>>, %arg3: memref<1x2x128xf32, #tpu.memory_space<vmem>>) attributes {dimension_semantics = [#tpu.dimension_semantics<parallel>], iteration_bounds = array<i64: 1>, scalar_prefetch = 0 : i64, scratch_operands = 0 : i64, tpu.core_type = #tpu.core_type<tc>, window_params = [{transform_indices = @transform_0, window_bounds = array<i64: 512, 128>}, {pipeline_mode = #tpu.pipeline_mode<synchronous>, transform_indices = @transform_1, window_bounds = array<i64: 128, 128>}, {transform_indices = @transform_2, window_bounds = array<i64: 1, 2, 128>}]} {
    %c0 = arith.constant 0 : index
    %c0_0 = arith.constant 0 : index
    %0 = vector.load %arg1[%c0, %c0_0] : memref<512x128xbf16, #tpu.memory_space<vmem>>, vector<512x128xbf16>
    %c0_1 = arith.constant 0 : index
    %c0_2 = arith.constant 0 : index
    %1 = vector.load %arg2[%c0_1, %c0_2] : memref<128x128xbf16, #tpu.memory_space<vmem>>, vector<128x128xbf16>
    %cst = arith.constant dense<0.000000e+00> : vector<512x128xf32>
    %2 = tpu.matmul %0, %1, %cst {dimension_numbers = #tpu.dot_dimension_numbers<[1], [0], [0], [1], [0, 0, 1, 1], [], []>} : vector<512x128xbf16>, vector<128x128xbf16>, vector<512x128xf32> -> vector<512x128xf32>
    %cst_3 = arith.constant dense<0.000000e+00> : vector<128xf32>
    %3 = vector.multi_reduction <add>, %2, %cst_3 [0] : vector<512x128xf32> to vector<128xf32>
    %4 = vector.shape_cast %3 : vector<128xf32> to vector<1x128xf32>
    %c0_4 = arith.constant 0 : index
    %c0_5 = arith.constant 0 : index
    %c0_6 = arith.constant 0 : index
    %5 = vector.load %arg3[%c0_4, %c0_5, %c0_6] : memref<1x2x128xf32, #tpu.memory_space<vmem>>, vector<1x1x128xf32>
    %6 = vector.shape_cast %5 : vector<1x1x128xf32> to vector<1x128xf32>
    %7 = vector.shape_cast %4 : vector<1x128xf32> to vector<1x1x128xf32>
    tpu.vector_store %arg3[%c0_4, %c0_5, %c0_6], %7 {strides = array<i32>} : memref<1x2x128xf32, #tpu.memory_space<vmem>>, vector<1x1x128xf32>,
    %8 = arith.mulf %2, %2 : vector<512x128xf32>
    %cst_7 = arith.constant dense<0.000000e+00> : vector<128xf32>
    %9 = vector.multi_reduction <add>, %8, %cst_7 [0] : vector<512x128xf32> to vector<128xf32>
    %10 = vector.shape_cast %9 : vector<128xf32> to vector<1x128xf32>
    %c0_8 = arith.constant 0 : index
    %c1 = arith.constant 1 : index
    %c0_9 = arith.constant 0 : index
    %11 = vector.load %arg3[%c0_8, %c1, %c0_9] : memref<1x2x128xf32, #tpu.memory_space<vmem>>, vector<1x1x128xf32>
    %12 = vector.shape_cast %11 : vector<1x1x128xf32> to vector<1x128xf32>
    %13 = vector.shape_cast %10 : vector<1x128xf32> to vector<1x1x128xf32>
    tpu.vector_store %arg3[%c0_8, %c1, %c0_9], %13 {strides = array<i32>} : memref<1x2x128xf32, #tpu.memory_space<vmem>>, vector<1x1x128xf32>,
    return
  }
  func.func @transform_0(%arg0: i32) -> (i32, i32) {
    %c0_i32 = arith.constant 0 : i32
    %c0_i32_0 = arith.constant 0 : i32
    return %arg0, %c0_i32 : i32, i32
  }
  func.func @transform_1(%arg0: i32) -> (i32, i32) {
    %c0_i32 = arith.constant 0 : i32
    %c0_i32_0 = arith.constant 0 : i32
    %c0_i32_1 = arith.constant 0 : i32
    return %c0_i32, %c0_i32_0 : i32, i32
  }
  func.func @transform_2(%arg0: i32) -> (i32, i32, i32) {
    %c0_i32 = arith.constant 0 : i32
    %c0_i32_0 = arith.constant 0 : i32
    %c0_i32_1 = arith.constant 0 : i32
    return %arg0, %c0_i32, %c0_i32_0 : i32, i32, i32
  }
}

module attributes {stable_mosaic.version = 11 : i64} {
  func.func @_gemm_bn_act_kernel(%arg0: i32, %arg1: memref<512x128xbf16, #tpu.memory_space<vmem>>, %arg2: memref<128x128xbf16, #tpu.memory_space<vmem>>, %arg3: memref<2x128xf32, #tpu.memory_space<vmem>>, %arg4: memref<512x128xf32, #tpu.memory_space<vmem>>) attributes {dimension_semantics = [#tpu.dimension_semantics<parallel>], iteration_bounds = array<i64: 1>, scalar_prefetch = 0 : i64, scratch_operands = 0 : i64, tpu.core_type = #tpu.core_type<tc>, window_params = [{transform_indices = @transform_0, window_bounds = array<i64: 512, 128>}, {pipeline_mode = #tpu.pipeline_mode<synchronous>, transform_indices = @transform_1, window_bounds = array<i64: 128, 128>}, {pipeline_mode = #tpu.pipeline_mode<synchronous>, transform_indices = @transform_2, window_bounds = array<i64: 2, 128>}, {transform_indices = @transform_3, window_bounds = array<i64: 512, 128>}]} {
    %c0 = arith.constant 0 : index
    %c0_0 = arith.constant 0 : index
    %0 = vector.load %arg1[%c0, %c0_0] : memref<512x128xbf16, #tpu.memory_space<vmem>>, vector<512x128xbf16>
    %c0_1 = arith.constant 0 : index
    %c0_2 = arith.constant 0 : index
    %1 = vector.load %arg2[%c0_1, %c0_2] : memref<128x128xbf16, #tpu.memory_space<vmem>>, vector<128x128xbf16>
    %cst = arith.constant dense<0.000000e+00> : vector<512x128xf32>
    %2 = tpu.matmul %0, %1, %cst {dimension_numbers = #tpu.dot_dimension_numbers<[1], [0], [0], [1], [0, 0, 1, 1], [], []>} : vector<512x128xbf16>, vector<128x128xbf16>, vector<512x128xf32> -> vector<512x128xf32>
    %c0_3 = arith.constant 0 : index
    %c0_4 = arith.constant 0 : index
    %3 = vector.load %arg3[%c0_3, %c0_4] : memref<2x128xf32, #tpu.memory_space<vmem>>, vector<1x128xf32>
    %4 = vector.broadcast %3 : vector<1x128xf32> to vector<512x128xf32>
    %5 = arith.mulf %2, %4 : vector<512x128xf32>
    %c1 = arith.constant 1 : index
    %c0_5 = arith.constant 0 : index
    %6 = vector.load %arg3[%c1, %c0_5] : memref<2x128xf32, #tpu.memory_space<vmem>>, vector<1x128xf32>
    %7 = vector.broadcast %6 : vector<1x128xf32> to vector<512x128xf32>
    %8 = arith.addf %5, %7 : vector<512x128xf32>
    %cst_6 = arith.constant 1.000000e-01 : f32
    %9 = vector.broadcast %cst_6 : f32 to vector<512x128xf32>
    %10 = arith.mulf %9, %8 : vector<512x128xf32>
    %11 = arith.maximumf %8, %10 : vector<512x128xf32>
    %c0_7 = arith.constant 0 : index
    %c0_8 = arith.constant 0 : index
    %12 = vector.load %arg4[%c0_7, %c0_8] : memref<512x128xf32, #tpu.memory_space<vmem>>, vector<512x128xf32>
    tpu.vector_store %arg4[%c0_7, %c0_8], %11 {strides = array<i32>} : memref<512x128xf32, #tpu.memory_space<vmem>>, vector<512x128xf32>,
    return
  }
  func.func @transform_0(%arg0: i32) -> (i32, i32) {
    %c0_i32 = arith.constant 0 : i32
    %c0_i32_0 = arith.constant 0 : i32
    return %arg0, %c0_i32 : i32, i32
  }
  func.func @transform_1(%arg0: i32) -> (i32, i32) {
    %c0_i32 = arith.constant 0 : i32
    %c0_i32_0 = arith.constant 0 : i32
    %c0_i32_1 = arith.constant 0 : i32
    return %c0_i32, %c0_i32_0 : i32, i32
  }
  func.func @transform_2(%arg0: i32) -> (i32, i32) {
    %c0_i32 = arith.constant 0 : i32
    %c0_i32_0 = arith.constant 0 : i32
    %c0_i32_1 = arith.constant 0 : i32
    return %c0_i32, %c0_i32_0 : i32, i32
  }
  func.func @transform_3(%arg0: i32) -> (i32, i32) {
    %c0_i32 = arith.constant 0 : i32
    %c0_i32_0 = arith.constant 0 : i32
    return %arg0, %c0_i32 : i32, i32
  }
}

</mosaic_0001>

<llo_original>
// kernel: cnn_block.2
$region0: #{cnn_block.2}
  #allocation0 [shape = 'u32[]', space=smem, size = 0x4, offset = 0x4, fixed_abs, tag = 'smem constant byte address 0x4 - core index']
  #allocation1 [shape = 'u32[72,128]{1,0:T(1,128)}', space=vmem, size = 0x9000, scoped, tag = 'internal scratch']
  %s0 = inlined_call_operand.vmem [shape: bf16[512,128], index: 0, kind: input, shape index: {}]
  %s1 = inlined_call_operand.vmem [shape: bf16[128,128], index: 1, kind: input, shape index: {}]
  %s2 = inlined_call_operand.vmem [shape: f32[1,2,128], index: 2, kind: output, shape index: {}]
  %s3 = sld [smem:[#allocation0]]
  $region18: #{cnn_block.2} parent=0
    _
  %s5 = ssub.s32 1, %s3
  %s6 = scalar_select 0, %s5, %s3
  // Predicated region
  $region2: #{cnn_block.2} parent=0 // pred_check
    _
  $region3: #{cnn_block.2} parent=0 // pred_check_branch
    %8 = sbr.rel (0) target = $region5
  $region4: #{cnn_block.2} parent=0 // pred_region
    _
  $region5: #{cnn_block.2} parent=0 // pred_fallthru
    _
  // Predicated region
  $region6: #{cnn_block.2} parent=0 // pred_check
    _
  $region7: #{cnn_block.2} parent=0 // pred_check_branch
    %10 = sbr.rel (0) target = $region9
  $region8: #{cnn_block.2} parent=0 // pred_region
    _
  $region9: #{cnn_block.2} parent=0 // pred_fallthru
    _
  %v11 = vld [vmem:[%s0] sm:$0xf]
  %v12 = vld [vmem:[%s0 + $0x4] sm:$0xf]
  %v13 = vld [vmem:[%s0 + $0x8] sm:$0xf]
  %v14 = vld [vmem:[%s0 + $0xc] sm:$0xf]
  %v15 = vld [vmem:[%s0 + $0x10] sm:$0xf]
  %v16 = vld [vmem:[%s0 + $0x14] sm:$0xf]
  %v17 = vld [vmem:[%s0 + $0x18] sm:$0xf]
  %v18 = vld [vmem:[%s0 + $0x1c] sm:$0xf]
  %v19 = vld [vmem:[%s0 + $0x20] sm:$0xf]
  %v20 = vld [vmem:[%s0 + $0x24] sm:$0xf]
  %v21 = vld [vmem:[%s0 + $0x28] sm:$0xf]
  %v22 = vld [vmem:[%s0 + $0x2c] sm:$0xf]
  %v23 = vld [vmem:[%s0 + $0x30] sm:$0xf]
  %v24 = vld [vmem:[%s0 + $0x34] sm:$0xf]
  %v25 = vld [vmem:[%s0 + $0x38] sm:$0xf]
  %v26 = vld [vmem:[%s0 + $0x3c] sm:$0xf]
  %v27 = vld [vmem:[%s0 + $0x40] sm:$0xf]
  %v28 = vld [vmem:[%s0 + $0x44] sm:$0xf]
  %v29 = vld [vmem:[%s0 + $0x48] sm:$0xf]
  %v30 = vld [vmem:[%s0 + $0x4c] sm:$0xf]
  %v31 = vld [vmem:[%s0 + $0x50] sm:$0xf]
  %v32 = vld [vmem:[%s0 + $0x54] sm:$0xf]
  %v33 = vld [vmem:[%s0 + $0x58] sm:$0xf]
  %v34 = vld [vmem:[%s0 + $0x5c] sm:$0xf]
  %v35 = vld [vmem:[%s0 + $0x60] sm:$0xf]
  %v36 = vld [vmem:[%s0 + $0x64] sm:$0xf]
  %v37 = vld [vmem:[%s0 + $0x68] sm:$0xf]
  %v38 = vld [vmem:[%s0 + $0x6c] sm:$0xf]
  %v39 = vld [vmem:[%s0 + $0x70] sm:$0xf]
  %v40 = vld [vmem:[%s0 + $0x74] sm:$0xf]
  %v41 = vld [vmem:[%s0 + $0x78] sm:$0xf]
  %v42 = vld [vmem:[%s0 + $0x7c] sm:$0xf]
  %v43 = vld [vmem:[%s0 + $0x80] sm:$0xf]
  %v44 = vld [vmem:[%s0 + $0x84] sm:$0xf]
  %v45 = vld [vmem:[%s0 + $0x88] sm:$0xf]
  %v46 = vld [vmem:[%s0 + $0x8c] sm:$0xf]
  %v47 = vld [vmem:[%s0 + $0x90] sm:$0xf]
  %v48 = vld [vmem:[%s0 + $0x94] sm:$0xf]
  %v49 = vld [vmem:[%s0 + $0x98] sm:$0xf]
  %v50 = vld [vmem:[%s0 + $0x9c] sm:$0xf]
  %v51 = vld [vmem:[%s0 + $0xa0] sm:$0xf]
  %v52 = vld [vmem:[%s0 + $0xa4] sm:$0xf]
  %v53 = vld [vmem:[%s0 + $0xa8] sm:$0xf]
  %v54 = vld [vmem:[%s0 + $0xac] sm:$0xf]
  %v55 = vld [vmem:[%s0 + $0xb0] sm:$0xf]
  %v56 = vld [vmem:[%s0 + $0xb4] sm:$0xf]
  %v57 = vld [vmem:[%s0 + $0xb8] sm:$0xf]
  %v58 = vld [vmem:[%s0 + $0xbc] sm:$0xf]
  %v59 = vld [vmem:[%s0 + $0xc0] sm:$0xf]
  %v60 = vld [vmem:[%s0 + $0xc4] sm:$0xf]
  %v61 = vld [vmem:[%s0 + $0xc8] sm:$0xf]
  %v62 = vld [vmem:[%s0 + $0xcc] sm:$0xf]
  %v63 = vld [vmem:[%s0 + $0xd0] sm:$0xf]
  %v64 = vld [vmem:[%s0 + $0xd4] sm:$0xf]
  %v65 = vld [vmem:[%s0 + $0xd8] sm:$0xf]
  %v66 = vld [vmem:[%s0 + $0xdc] sm:$0xf]
  %v67 = vld [vmem:[%s0 + $0xe0] sm:$0xf]
  %v68 = vld [vmem:[%s0 + $0xe4] sm:$0xf]
  %v69 = vld [vmem:[%s0 + $0xe8] sm:$0xf]
  %v70 = vld [vmem:[%s0 + $0xec] sm:$0xf]
  %v71 = vld [vmem:[%s0 + $0xf0] sm:$0xf]
  %v72 = vld [vmem:[%s0 + $0xf4] sm:$0xf]
  %v73 = vld [vmem:[%s0 + $0xf8] sm:$0xf]
  %v74 = vld [vmem:[%s0 + $0xfc] sm:$0xf]
  %v75 = vld [vmem:[%s1] sm:$0xf]
  %v76 = vld [vmem:[%s1 + $0x4] sm:$0xf]
  %v77 = vld [vmem:[%s1 + $0x8] sm:$0xf]
  %v78 = vld [vmem:[%s1 + $0xc] sm:$0xf]
  %v79 = vld [vmem:[%s1 + $0x10] sm:$0xf]
  %v80 = vld [vmem:[%s1 + $0x14] sm:$0xf]
  %v81 = vld [vmem:[%s1 + $0x18] sm:$0xf]
  %v82 = vld [vmem:[%s1 + $0x1c] sm:$0xf]
  %v83 = vld [vmem:[%s1 + $0x20] sm:$0xf]
  %v84 = vld [vmem:[%s1 + $0x24] sm:$0xf]
  %v85 = vld [vmem:[%s1 + $0x28] sm:$0xf]
  %v86 = vld [vmem:[%s1 + $0x2c] sm:$0xf]
  %v87 = vld [vmem:[%s1 + $0x30] sm:$0xf]
  %v88 = vld [vmem:[%s1 + $0x34] sm:$0xf]
  %v89 = vld [vmem:[%s1 + $0x38] sm:$0xf]
  %v90 = vld [vmem:[%s1 + $0x3c] sm:$0xf]
  %v155 = vunpack.c.l.b16 %v11
  %v156 = vunpack.c.l.b16 %v12
  %v157 = vunpack.c.l.b16 %v13
  %v158 = vunpack.c.l.b16 %v14
  %v159 = vunpack.c.l.b16 %v15
  %v160 = vunpack.c.l.b16 %v16
  %v161 = vunpack.c.l.b16 %v17
  %v162 = vunpack.c.l.b16 %v18
  %v163 = vunpack.c.l.b16 %v19
  %v164 = vunpack.c.l.b16 %v20
  %v165 = vunpack.c.l.b16 %v21
  %v166 = vunpack.c.l.b16 %v22
  %v167 = vunpack.c.l.b16 %v23
  %v168 = vunpack.c.l.b16 %v24
  %v169 = vunpack.c.l.b16 %v25
  %v170 = vunpack.c.l.b16 %v26
  %v171 = vunpack.c.l.b16 %v27
  %v172 = vunpack.c.l.b16 %v28
  %v173 = vunpack.c.l.b16 %v29
  %v174 = vunpack.c.l.b16 %v30
  %v175 = vunpack.c.l.b16 %v31
  %v176 = vunpack.c.l.b16 %v32
  %v177 = vunpack.c.l.b16 %v33
  %v178 = vunpack.c.l.b16 %v34
  %v179 = vunpack.c.l.b16 %v35
  %v180 = vunpack.c.l.b16 %v36
  %v181 = vunpack.c.l.b16 %v37
  %v182 = vunpack.c.l.b16 %v38
  %v183 = vunpack.c.l.b16 %v39
  %v184 = vunpack.c.l.b16 %v40
  %v185 = vunpack.c.l.b16 %v41
  %v186 = vunpack.c.l.b16 %v42
  %v187 = vunpack.c.l.b16 %v43
  %v188 = vunpack.c.l.b16 %v44
  %v189 = vunpack.c.l.b16 %v45
  %v190 = vunpack.c.l.b16 %v46
  %v191 = vunpack.c.l.b16 %v47
  %v192 = vunpack.c.l.b16 %v48
  %v193 = vunpack.c.l.b16 %v49
  %v194 = vunpack.c.l.b16 %v50
  %v195 = vunpack.c.l.b16 %v51
  %v196 = vunpack.c.l.b16 %v52
  %v197 = vunpack.c.l.b16 %v53
  %v198 = vunpack.c.l.b16 %v54
  %v199 = vunpack.c.l.b16 %v55
  %v200 = vunpack.c.l.b16 %v56
  %v201 = vunpack.c.l.b16 %v57
  %v202 = vunpack.c.l.b16 %v58
  %v203 = vunpack.c.l.b16 %v59
  %v204 = vunpack.c.l.b16 %v60
  %v205 = vunpack.c.l.b16 %v61
  %v206 = vunpack.c.l.b16 %v62
  %v207 = vunpack.c.l.b16 %v63
  %v208 = vunpack.c.l.b16 %v64
  %v209 = vunpack.c.l.b16 %v65
  %v210 = vunpack.c.l.b16 %v66
  %v211 = vunpack.c.l.b16 %v67
  %v212 = vunpack.c.l.b16 %v68
  %v213 = vunpack.c.l.b16 %v69
  %v214 = vunpack.c.l.b16 %v70
  %v215 = vunpack.c.l.b16 %v71
  %v216 = vunpack.c.l.b16 %v72
  %v217 = vunpack.c.l.b16 %v73
  %v218 = vunpack.c.l.b16 %v74
  %v219 = vpack.c.b16 %v156, %v155
  %v220 = vpack.c.b16 %v158, %v157
  %v221 = vpack.c.b16 %v160, %v159
  %v222 = vpack.c.b16 %v162, %v161
  %v223 = vpack.c.b16 %v164, %v163
  %v224 = vpack.c.b16 %v166, %v165
  %v225 = vpack.c.b16 %v168, %v167
  %v226 = vpack.c.b16 %v170, %v169
  %v227 = vpack.c.b16 %v172, %v171
  %v228 = vpack.c.b16 %v174, %v173
  %v229 = vpack.c.b16 %v176, %v175
  %v230 = vpack.c.b16 %v178, %v177
  %v231 = vpack.c.b16 %v180, %v179
  %v232 = vpack.c.b16 %v182, %v181
  %v233 = vpack.c.b16 %v184, %v183
  %v234 = vpack.c.b16 %v186, %v185
  %v235 = vpack.c.b16 %v188, %v187
  %v236 = vpack.c.b16 %v190, %v189
  %v237 = vpack.c.b16 %v192, %v191
  %v238 = vpack.c.b16 %v194, %v193
  %v239 = vpack.c.b16 %v196, %v195
  %v240 = vpack.c.b16 %v198, %v197
  %v241 = vpack.c.b16 %v200, %v199
  %v242 = vpack.c.b16 %v202, %v201
  %v243 = vpack.c.b16 %v204, %v203
  %v244 = vpack.c.b16 %v206, %v205
  %v245 = vpack.c.b16 %v208, %v207
  %v246 = vpack.c.b16 %v210, %v209
  %v247 = vpack.c.b16 %v212, %v211
  %v248 = vpack.c.b16 %v214, %v213
  %v249 = vpack.c.b16 %v216, %v215
  %v250 = vpack.c.b16 %v218, %v217
  %v299 = vunpack.c.l.b16 %v75
  %v300 = vunpack.c.l.b16 %v76
  %v301 = vunpack.c.l.b16 %v77
  %v302 = vunpack.c.l.b16 %v78
  %v303 = vunpack.c.l.b16 %v79
  %v304 = vunpack.c.l.b16 %v80
  %v305 = vunpack.c.l.b16 %v81
  %v306 = vunpack.c.l.b16 %v82
  %v307 = vunpack.c.l.b16 %v83
  %v308 = vunpack.c.l.b16 %v84
  %v309 = vunpack.c.l.b16 %v85
  %v310 = vunpack.c.l.b16 %v86
  %v311 = vunpack.c.l.b16 %v87
  %v312 = vunpack.c.l.b16 %v88
  %v313 = vunpack.c.l.b16 %v89
  %v314 = vunpack.c.l.b16 %v90
  %v315 = vpack.c.b16 %v300, %v299
  %v316 = vpack.c.b16 %v302, %v301
  %v317 = vpack.c.b16 %v304, %v303
  %v318 = vpack.c.b16 %v306, %v305
  %v319 = vpack.c.b16 %v308, %v307
  %v320 = vpack.c.b16 %v310, %v309
  %v321 = vpack.c.b16 %v312, %v311
  %v322 = vpack.c.b16 %v314, %v313
  %331 = vmatpush.bf16.msra.mxu0 %v322
  %332 = vmatpush.bf16.msra.mxu0 %v321
  %333 = vmatpush.bf16.msra.mxu0 %v320
  %334 = vmatpush.bf16.msra.mxu0 %v319
  %335 = vmatpush.bf16.msra.mxu0 %v318
  %336 = vmatpush.bf16.msra.mxu0 %v317
  %337 = vmatpush.bf16.msra.mxu0 %v316
  %338 = vmatpush.bf16.msra.mxu0 %v315
  %339 = vmatmul.bf16.gmra.mxu0 %v219
  %v340 = vpop.f32.mrf.mxu0
  %v341 = vadd.f32 0.0, %v340
  %v342 = vpop.f32.mrf.mxu0
  %v343 = vadd.f32 0.0, %v342
  %344 = vmatmul.bf16.gmra.mxu0 %v220
  %v345 = vpop.f32.mrf.mxu0
  %v346 = vadd.f32 0.0, %v345
  %v347 = vpop.f32.mrf.mxu0
  %v348 = vadd.f32 0.0, %v347
  %349 = vmatmul.bf16.gmra.mxu0 %v221
  %v350 = vpop.f32.mrf.mxu0
  %v351 = vadd.f32 0.0, %v350
  %v352 = vpop.f32.mrf.mxu0
  %v353 = vadd.f32 0.0, %v352
  %354 = vmatmul.bf16.gmra.mxu0 %v222
  %v355 = vpop.f32.mrf.mxu0
  %v356 = vadd.f32 0.0, %v355
  %v357 = vpop.f32.mrf.mxu0
  %v358 = vadd.f32 0.0, %v357
  %359 = vmatmul.bf16.gmra.mxu0 %v223
  %v360 = vpop.f32.mrf.mxu0
  %v361 = vadd.f32 0.0, %v360
  %v362 = vpop.f32.mrf.mxu0
  %v363 = vadd.f32 0.0, %v362
  %364 = vmatmul.bf16.gmra.mxu0 %v224
  %v365 = vpop.f32.mrf.mxu0
  %v366 = vadd.f32 0.0, %v365
  %v367 = vpop.f32.mrf.mxu0
  %v368 = vadd.f32 0.0, %v367
  %369 = vmatmul.bf16.gmra.mxu0 %v225
  %v370 = vpop.f32.mrf.mxu0
  %v371 = vadd.f32 0.0, %v370
  %v372 = vpop.f32.mrf.mxu0
  %v373 = vadd.f32 0.0, %v372
  %374 = vmatmul.bf16.gmra.mxu0 %v226
  %v375 = vpop.f32.mrf.mxu0
  %v376 = vadd.f32 0.0, %v375
  %v377 = vpop.f32.mrf.mxu0
  %v378 = vadd.f32 0.0, %v377
  %379 = vmatmul.bf16.gmra.mxu0 %v227
  %v380 = vpop.f32.mrf.mxu0
  %v381 = vadd.f32 0.0, %v380
  %v382 = vpop.f32.mrf.mxu0
  %v383 = vadd.f32 0.0, %v382
  %384 = vmatmul.bf16.gmra.mxu0 %v228
  %v385 = vpop.f32.mrf.mxu0
  %v386 = vadd.f32 0.0, %v385
  %v387 = vpop.f32.mrf.mxu0
  %v388 = vadd.f32 0.0, %v387
  %389 = vmatmul.bf16.gmra.mxu0 %v229
  %v390 = vpop.f32.mrf.mxu0
  %v391 = vadd.f32 0.0, %v390
  %v392 = vpop.f32.mrf.mxu0
  %v393 = vadd.f32 0.0, %v392
  %394 = vmatmul.bf16.gmra.mxu0 %v230
  %v395 = vpop.f32.mrf.mxu0
  %v396 = vadd.f32 0.0, %v395
  %v397 = vpop.f32.mrf.mxu0
  %v398 = vadd.f32 0.0, %v397
  %399 = vmatmul.bf16.gmra.mxu0 %v231
  %v400 = vpop.f32.mrf.mxu0
  %v401 = vadd.f32 0.0, %v400
  %v402 = vpop.f32.mrf.mxu0
  %v403 = vadd.f32 0.0, %v402
  %404 = vmatmul.bf16.gmra.mxu0 %v232
  %v405 = vpop.f32.mrf.mxu0
  %v406 = vadd.f32 0.0, %v405
  %v407 = vpop.f32.mrf.mxu0
  %v408 = vadd.f32 0.0, %v407
  %409 = vmatmul.bf16.gmra.mxu0 %v233
  %v410 = vpop.f32.mrf.mxu0
  %v411 = vadd.f32 0.0, %v410
  %v412 = vpop.f32.mrf.mxu0
  %v413 = vadd.f32 0.0, %v412
  %414 = vmatmul.bf16.gmra.mxu0 %v234
  %v415 = vpop.f32.mrf.mxu0
  %v416 = vadd.f32 0.0, %v415
  %v417 = vpop.f32.mrf.mxu0
  %v418 = vadd.f32 0.0, %v417
  %419 = vmatmul.bf16.gmra.mxu0 %v235
  %v420 = vpop.f32.mrf.mxu0
  %v421 = vadd.f32 0.0, %v420
  %v422 = vpop.f32.mrf.mxu0
  %v423 = vadd.f32 0.0, %v422
  %424 = vmatmul.bf16.gmra.mxu0 %v236
  %v425 = vpop.f32.mrf.mxu0
  %v426 = vadd.f32 0.0, %v425
  %v427 = vpop.f32.mrf.mxu0
  %v428 = vadd.f32 0.0, %v427
  %429 = vmatmul.bf16.gmra.mxu0 %v237
  %v430 = vpop.f32.mrf.mxu0
  %v431 = vadd.f32 0.0, %v430
  %v432 = vpop.f32.mrf.mxu0
  %v433 = vadd.f32 0.0, %v432
  %434 = vmatmul.bf16.gmra.mxu0 %v238
  %v435 = vpop.f32.mrf.mxu0
  %v436 = vadd.f32 0.0, %v435
  %v437 = vpop.f32.mrf.mxu0
  %v438 = vadd.f32 0.0, %v437
  %439 = vmatmul.bf16.gmra.mxu0 %v239
  %v440 = vpop.f32.mrf.mxu0
  %v441 = vadd.f32 0.0, %v440
  %v442 = vpop.f32.mrf.mxu0
  %v443 = vadd.f32 0.0, %v442
  %444 = vmatmul.bf16.gmra.mxu0 %v240
  %v445 = vpop.f32.mrf.mxu0
  %v446 = vadd.f32 0.0, %v445
  %v447 = vpop.f32.mrf.mxu0
  %v448 = vadd.f32 0.0, %v447
  %449 = vmatmul.bf16.gmra.mxu0 %v241
  %v450 = vpop.f32.mrf.mxu0
  %v451 = vadd.f32 0.0, %v450
  %v452 = vpop.f32.mrf.mxu0
  %v453 = vadd.f32 0.0, %v452
  %454 = vmatmul.bf16.gmra.mxu0 %v242
  %v455 = vpop.f32.mrf.mxu0
  %v456 = vadd.f32 0.0, %v455
  %v457 = vpop.f32.mrf.mxu0
  %v458 = vadd.f32 0.0, %v457
  %459 = vmatmul.bf16.gmra.mxu0 %v243
  %v460 = vpop.f32.mrf.mxu0
  %v461 = vadd.f32 0.0, %v460
  %v462 = vpop.f32.mrf.mxu0
  %v463 = vadd.f32 0.0, %v462
  %464 = vmatmul.bf16.gmra.mxu0 %v244
  %v465 = vpop.f32.mrf.mxu0
  %v466 = vadd.f32 0.0, %v465
  %v467 = vpop.f32.mrf.mxu0
  %v468 = vadd.f32 0.0, %v467
  %469 = vmatmul.bf16.gmra.mxu0 %v245
  %v470 = vpop.f32.mrf.mxu0
  %v471 = vadd.f32 0.0, %v470
  %v472 = vpop.f32.mrf.mxu0
  %v473 = vadd.f32 0.0, %v472
  %474 = vmatmul.bf16.gmra.mxu0 %v246
  %v475 = vpop.f32.mrf.mxu0
  %v476 = vadd.f32 0.0, %v475
  %v477 = vpop.f32.mrf.mxu0
  %v478 = vadd.f32 0.0, %v477
  %479 = vmatmul.bf16.gmra.mxu0 %v247
  %v480 = vpop.f32.mrf.mxu0
  %v481 = vadd.f32 0.0, %v480
  %v482 = vpop.f32.mrf.mxu0
  %v483 = vadd.f32 0.0, %v482
  %484 = vmatmul.bf16.gmra.mxu0 %v248
  %v485 = vpop.f32.mrf.mxu0
  %v486 = vadd.f32 0.0, %v485
  %v487 = vpop.f32.mrf.mxu0
  %v488 = vadd.f32 0.0, %v487
  %489 = vmatmul.bf16.gmra.mxu0 %v249
  %v490 = vpop.f32.mrf.mxu0
  %v491 = vadd.f32 0.0, %v490
  %v492 = vpop.f32.mrf.mxu0
  %v493 = vadd.f32 0.0, %v492
  %494 = vmatmul.bf16.gmra.mxu0 %v250
  %v495 = vpop.f32.mrf.mxu0
  %v496 = vadd.f32 0.0, %v495
  %v497 = vpop.f32.mrf.mxu0
  %v498 = vadd.f32 0.0, %v497
  %499 = vdwg.mxu0
  %v500 = vadd.f32 %v341, %v343
  %v501 = vadd.f32 %v500, %v346
  %v502 = vadd.f32 %v501, %v348
  %v503 = vadd.f32 %v502, %v351
  %v504 = vadd.f32 %v503, %v353
  %v505 = vadd.f32 %v504, %v356
  %v506 = vadd.f32 %v505, %v358
  %v507 = vadd.f32 %v506, %v361
  %v508 = vadd.f32 %v507, %v363
  %v509 = vadd.f32 %v508, %v366
  %v510 = vadd.f32 %v509, %v368
  %v511 = vadd.f32 %v510, %v371
  %v512 = vadd.f32 %v511, %v373
  %v513 = vadd.f32 %v512, %v376
  %v514 = vadd.f32 %v513, %v378
  %v515 = vadd.f32 %v514, %v381
  %v516 = vadd.f32 %v515, %v383
  %v517 = vadd.f32 %v516, %v386
  %v518 = vadd.f32 %v517, %v388
  %v519 = vadd.f32 %v518, %v391
  %v520 = vadd.f32 %v519, %v393
  %v521 = vadd.f32 %v520, %v396
  %v522 = vadd.f32 %v521, %v398
  %v523 = vadd.f32 %v522, %v401
  %v524 = vadd.f32 %v523, %v403
  %v525 = vadd.f32 %v524, %v406
  %v526 = vadd.f32 %v525, %v408
  %v527 = vadd.f32 %v526, %v411
  %v528 = vadd.f32 %v527, %v413
  %v529 = vadd.f32 %v528, %v416
  %v530 = vadd.f32 %v529, %v418
  %v531 = vadd.f32 %v530, %v421
  %v532 = vadd.f32 %v531, %v423
  %v533 = vadd.f32 %v532, %v426
  %v534 = vadd.f32 %v533, %v428
  %v535 = vadd.f32 %v534, %v431
  %v536 = vadd.f32 %v535, %v433
  %v537 = vadd.f32 %v536, %v436
  %v538 = vadd.f32 %v537, %v438
  %v539 = vadd.f32 %v538, %v441
  %v540 = vadd.f32 %v539, %v443
  %v541 = vadd.f32 %v540, %v446
  %v542 = vadd.f32 %v541, %v448
  %v543 = vadd.f32 %v542, %v451
  %v544 = vadd.f32 %v543, %v453
  %v545 = vadd.f32 %v544, %v456
  %v546 = vadd.f32 %v545, %v458
  %v547 = vadd.f32 %v546, %v461
  %v548 = vadd.f32 %v547, %v463
  %v549 = vadd.f32 %v548, %v466
  %v550 = vadd.f32 %v549, %v468
  %v551 = vadd.f32 %v550, %v471
  %v552 = vadd.f32 %v551, %v473
  %v553 = vadd.f32 %v552, %v476
  %v554 = vadd.f32 %v553, %v478
  %v555 = vadd.f32 %v554, %v481
  %v556 = vadd.f32 %v555, %v483
  %v557 = vadd.f32 %v556, %v486
  %v558 = vadd.f32 %v557, %v488
  %v559 = vadd.f32 %v558, %v491
  %v560 = vadd.f32 %v559, %v493
  %v561 = vadd.f32 %v560, %v496
  %v562 = vadd.f32 %v561, %v498
  %v563 = vrot.slane %v562, 4
  %v564 = vadd.f32 %v562, %v563
  %v565 = vrot.slane %v564, 2
  %v566 = vadd.f32 %v564, %v565
  %v567 = vrot.slane %v566, 1
  %v568 = vadd.f32 %v566, %v567
  %569 = vst [vmem:[%s2] sm:$0x1] %v568
  %v570 = vmul.f32 %v341, %v341
  %v571 = vmul.f32 %v343, %v343
  %v572 = vmul.f32 %v346, %v346
  %v573 = vmul.f32 %v348, %v348
  %v574 = vmul.f32 %v351, %v351
  %v575 = vmul.f32 %v353, %v353
  %v576 = vmul.f32 %v356, %v356
  %v577 = vmul.f32 %v358, %v358
  %v578 = vmul.f32 %v361, %v361
  %v579 = vmul.f32 %v363, %v363
  %v580 = vmul.f32 %v366, %v366
  %v581 = vmul.f32 %v368, %v368
  %v582 = vmul.f32 %v371, %v371
  %v583 = vmul.f32 %v373, %v373
  %v584 = vmul.f32 %v376, %v376
  %v585 = vmul.f32 %v378, %v378
  %v586 = vmul.f32 %v381, %v381
  %v587 = vmul.f32 %v383, %v383
  %v588 = vmul.f32 %v386, %v386
  %v589 = vmul.f32 %v388, %v388
  %v590 = vmul.f32 %v391, %v391
  %v591 = vmul.f32 %v393, %v393
  %v592 = vmul.f32 %v396, %v396
  %v593 = vmul.f32 %v398, %v398
  %v594 = vmul.f32 %v401, %v401
  %v595 = vmul.f32 %v403, %v403
  %v596 = vmul.f32 %v406, %v406
  %v597 = vmul.f32 %v408, %v408
  %v598 = vmul.f32 %v411, %v411
  %v599 = vmul.f32 %v413, %v413
  %v600 = vmul.f32 %v416, %v416
  %v601 = vmul.f32 %v418, %v418
  %v602 = vmul.f32 %v421, %v421
  %v603 = vmul.f32 %v423, %v423
  %v604 = vmul.f32 %v426, %v426
  %v605 = vmul.f32 %v428, %v428
  %v606 = vmul.f32 %v431, %v431
  %v607 = vmul.f32 %v433, %v433
  %v608 = vmul.f32 %v436, %v436
  %v609 = vmul.f32 %v438, %v438
  %v610 = vmul.f32 %v441, %v441
  %v611 = vmul.f32 %v443, %v443
  %v612 = vmul.f32 %v446, %v446
  %v613 = vmul.f32 %v448, %v448
  %v614 = vmul.f32 %v451, %v451
  %v615 = vmul.f32 %v453, %v453
  %v616 = vmul.f32 %v456, %v456
  %v617 = vmul.f32 %v458, %v458
  %v618 = vmul.f32 %v461, %v461
  %v619 = vmul.f32 %v463, %v463
  %v620 = vmul.f32 %v466, %v466
  %v621 = vmul.f32 %v468, %v468
  %v622 = vmul.f32 %v471, %v471
  %v623 = vmul.f32 %v473, %v473
  %v624 = vmul.f32 %v476, %v476
  %v625 = vmul.f32 %v478, %v478
  %v626 = vmul.f32 %v481, %v481
  %v627 = vmul.f32 %v483, %v483
  %v628 = vmul.f32 %v486, %v486
  %v629 = vmul.f32 %v488, %v488
  %v630 = vmul.f32 %v491, %v491
  %v631 = vmul.f32 %v493, %v493
  %v632 = vmul.f32 %v496, %v496
  %v633 = vmul.f32 %v498, %v498
  %v634 = vadd.f32 %v570, %v571
  %v635 = vadd.f32 %v634, %v572
  %v636 = vadd.f32 %v635, %v573
  %v637 = vadd.f32 %v636, %v574
  %v638 = vadd.f32 %v637, %v575
  %v639 = vadd.f32 %v638, %v576
  %v640 = vadd.f32 %v639, %v577
  %v641 = vadd.f32 %v640, %v578
  %v642 = vadd.f32 %v641, %v579
  %v643 = vadd.f32 %v642, %v580
  %v644 = vadd.f32 %v643, %v581
  %v645 = vadd.f32 %v644, %v582
  %v646 = vadd.f32 %v645, %v583
  %v647 = vadd.f32 %v646, %v584
  %v648 = vadd.f32 %v647, %v585
  %v649 = vadd.f32 %v648, %v586
  %v650 = vadd.f32 %v649, %v587
  %v651 = vadd.f32 %v650, %v588
  %v652 = vadd.f32 %v651, %v589
  %v653 = vadd.f32 %v652, %v590
  %v654 = vadd.f32 %v653, %v591
  %v655 = vadd.f32 %v654, %v592
  %v656 = vadd.f32 %v655, %v593
  %v657 = vadd.f32 %v656, %v594
  %v658 = vadd.f32 %v657, %v595
  %v659 = vadd.f32 %v658, %v596
  %v660 = vadd.f32 %v659, %v597
  %v661 = vadd.f32 %v660, %v598
  %v662 = vadd.f32 %v661, %v599
  %v663 = vadd.f32 %v662, %v600
  %v664 = vadd.f32 %v663, %v601
  %v665 = vadd.f32 %v664, %v602
  %v666 = vadd.f32 %v665, %v603
  %v667 = vadd.f32 %v666, %v604
  %v668 = vadd.f32 %v667, %v605
  %v669 = vadd.f32 %v668, %v606
  %v670 = vadd.f32 %v669, %v607
  %v671 = vadd.f32 %v670, %v608
  %v672 = vadd.f32 %v671, %v609
  %v673 = vadd.f32 %v672, %v610
  %v674 = vadd.f32 %v673, %v611
  %v675 = vadd.f32 %v674, %v612
  %v676 = vadd.f32 %v675, %v613
  %v677 = vadd.f32 %v676, %v614
  %v678 = vadd.f32 %v677, %v615
  %v679 = vadd.f32 %v678, %v616
  %v680 = vadd.f32 %v679, %v617
  %v681 = vadd.f32 %v680, %v618
  %v682 = vadd.f32 %v681, %v619
  %v683 = vadd.f32 %v682, %v620
  %v684 = vadd.f32 %v683, %v621
  %v685 = vadd.f32 %v684, %v622
  %v686 = vadd.f32 %v685, %v623
  %v687 = vadd.f32 %v686, %v624
  %v688 = vadd.f32 %v687, %v625
  %v689 = vadd.f32 %v688, %v626
  %v690 = vadd.f32 %v689, %v627
  %v691 = vadd.f32 %v690, %v628
  %v692 = vadd.f32 %v691, %v629
  %v693 = vadd.f32 %v692, %v630
  %v694 = vadd.f32 %v693, %v631
  %v695 = vadd.f32 %v694, %v632
  %v696 = vadd.f32 %v695, %v633
  %v697 = vrot.slane %v696, 4
  %v698 = vadd.f32 %v696, %v697
  %v699 = vrot.slane %v698, 2
  %v700 = vadd.f32 %v698, %v699
  %v701 = vrot.slane %v700, 1
  %v702 = vadd.f32 %v700, %v701
  %703 = vst [vmem:[%s2 + $0x1] sm:$0x1] %v702
  // Predicated region
  $region10: #{cnn_block.2} parent=0 // pred_check
    _
  $region11: #{cnn_block.2} parent=0 // pred_check_branch
    %705 = sbr.rel (0) target = $region13
  $region12: #{cnn_block.2} parent=0 // pred_region
    _
  $region13: #{cnn_block.2} parent=0 // pred_fallthru
    _
  // Predicated region
  $region14: #{cnn_block.2} parent=0 // pred_check
    _
  $region15: #{cnn_block.2} parent=0 // pred_check_branch
    %707 = sbr.rel (0) target = $region17
  $region16: #{cnn_block.2} parent=0 // pred_region
    _
  $region17: #{cnn_block.2} parent=0 // pred_fallthru
    _

// kernel: cnn_block.3
$region0: #{cnn_block.3}
  #allocation0 [shape = 'u32[]', space=smem, size = 0x4, offset = 0x4, fixed_abs, tag = 'smem constant byte address 0x4 - core index']
  #allocation1 [shape = 'u32[72,128]{1,0:T(1,128)}', space=vmem, size = 0x9000, scoped, tag = 'internal scratch']
  %s0 = inlined_call_operand.vmem [shape: bf16[512,128], index: 0, kind: input, shape index: {}]
  %s1 = inlined_call_operand.vmem [shape: bf16[128,128], index: 1, kind: input, shape index: {}]
  %s2 = inlined_call_operand.vmem [shape: f32[2,128], index: 2, kind: input, shape index: {}]
  %s3 = inlined_call_operand.vmem [shape: f32[512,128], index: 3, kind: output, shape index: {}]
  %s4 = sld [smem:[#allocation0]]
  $region22: #{cnn_block.3} parent=0
    _
  %s6 = ssub.s32 1, %s4
  %s7 = scalar_select 0, %s6, %s4
  // Predicated region
  $region2: #{cnn_block.3} parent=0 // pred_check
    _
  $region3: #{cnn_block.3} parent=0 // pred_check_branch
    %9 = sbr.rel (0) target = $region5
  $region4: #{cnn_block.3} parent=0 // pred_region
    _
  $region5: #{cnn_block.3} parent=0 // pred_fallthru
    _
  // Predicated region
  $region6: #{cnn_block.3} parent=0 // pred_check
    _
  $region7: #{cnn_block.3} parent=0 // pred_check_branch
    %11 = sbr.rel (0) target = $region9
  $region8: #{cnn_block.3} parent=0 // pred_region
    _
  $region9: #{cnn_block.3} parent=0 // pred_fallthru
    _
  // Predicated region
  $region10: #{cnn_block.3} parent=0 // pred_check
    _
  $region11: #{cnn_block.3} parent=0 // pred_check_branch
    %13 = sbr.rel (0) target = $region13
  $region12: #{cnn_block.3} parent=0 // pred_region
    _
  $region13: #{cnn_block.3} parent=0 // pred_fallthru
    _
  %v14 = vld [vmem:[%s0] sm:$0xf]
  %v15 = vld [vmem:[%s0 + $0x4] sm:$0xf]
  %v16 = vld [vmem:[%s0 + $0x8] sm:$0xf]
  %v17 = vld [vmem:[%s0 + $0xc] sm:$0xf]
  %v18 = vld [vmem:[%s0 + $0x10] sm:$0xf]
  %v19 = vld [vmem:[%s0 + $0x14] sm:$0xf]
  %v20 = vld [vmem:[%s0 + $0x18] sm:$0xf]
  %v21 = vld [vmem:[%s0 + $0x1c] sm:$0xf]
  %v22 = vld [vmem:[%s0 + $0x20] sm:$0xf]
  %v23 = vld [vmem:[%s0 + $0x24] sm:$0xf]
  %v24 = vld [vmem:[%s0 + $0x28] sm:$0xf]
  %v25 = vld [vmem:[%s0 + $0x2c] sm:$0xf]
  %v26 = vld [vmem:[%s0 + $0x30] sm:$0xf]
  %v27 = vld [vmem:[%s0 + $0x34] sm:$0xf]
  %v28 = vld [vmem:[%s0 + $0x38] sm:$0xf]
  %v29 = vld [vmem:[%s0 + $0x3c] sm:$0xf]
  %v30 = vld [vmem:[%s0 + $0x40] sm:$0xf]
  %v31 = vld [vmem:[%s0 + $0x44] sm:$0xf]
  %v32 = vld [vmem:[%s0 + $0x48] sm:$0xf]
  %v33 = vld [vmem:[%s0 + $0x4c] sm:$0xf]
  %v34 = vld [vmem:[%s0 + $0x50] sm:$0xf]
  %v35 = vld [vmem:[%s0 + $0x54] sm:$0xf]
  %v36 = vld [vmem:[%s0 + $0x58] sm:$0xf]
  %v37 = vld [vmem:[%s0 + $0x5c] sm:$0xf]
  %v38 = vld [vmem:[%s0 + $0x60] sm:$0xf]
  %v39 = vld [vmem:[%s0 + $0x64] sm:$0xf]
  %v40 = vld [vmem:[%s0 + $0x68] sm:$0xf]
  %v41 = vld [vmem:[%s0 + $0x6c] sm:$0xf]
  %v42 = vld [vmem:[%s0 + $0x70] sm:$0xf]
  %v43 = vld [vmem:[%s0 + $0x74] sm:$0xf]
  %v44 = vld [vmem:[%s0 + $0x78] sm:$0xf]
  %v45 = vld [vmem:[%s0 + $0x7c] sm:$0xf]
  %v46 = vld [vmem:[%s0 + $0x80] sm:$0xf]
  %v47 = vld [vmem:[%s0 + $0x84] sm:$0xf]
  %v48 = vld [vmem:[%s0 + $0x88] sm:$0xf]
  %v49 = vld [vmem:[%s0 + $0x8c] sm:$0xf]
  %v50 = vld [vmem:[%s0 + $0x90] sm:$0xf]
  %v51 = vld [vmem:[%s0 + $0x94] sm:$0xf]
  %v52 = vld [vmem:[%s0 + $0x98] sm:$0xf]
  %v53 = vld [vmem:[%s0 + $0x9c] sm:$0xf]
  %v54 = vld [vmem:[%s0 + $0xa0] sm:$0xf]
  %v55 = vld [vmem:[%s0 + $0xa4] sm:$0xf]
  %v56 = vld [vmem:[%s0 + $0xa8] sm:$0xf]
  %v57 = vld [vmem:[%s0 + $0xac] sm:$0xf]
  %v58 = vld [vmem:[%s0 + $0xb0] sm:$0xf]
  %v59 = vld [vmem:[%s0 + $0xb4] sm:$0xf]
  %v60 = vld [vmem:[%s0 + $0xb8] sm:$0xf]
  %v61 = vld [vmem:[%s0 + $0xbc] sm:$0xf]
  %v62 = vld [vmem:[%s0 + $0xc0] sm:$0xf]
  %v63 = vld [vmem:[%s0 + $0xc4] sm:$0xf]
  %v64 = vld [vmem:[%s0 + $0xc8] sm:$0xf]
  %v65 = vld [vmem:[%s0 + $0xcc] sm:$0xf]
  %v66 = vld [vmem:[%s0 + $0xd0] sm:$0xf]
  %v67 = vld [vmem:[%s0 + $0xd4] sm:$0xf]
  %v68 = vld [vmem:[%s0 + $0xd8] sm:$0xf]
  %v69 = vld [vmem:[%s0 + $0xdc] sm:$0xf]
  %v70 = vld [vmem:[%s0 + $0xe0] sm:$0xf]
  %v71 = vld [vmem:[%s0 + $0xe4] sm:$0xf]
  %v72 = vld [vmem:[%s0 + $0xe8] sm:$0xf]
  %v73 = vld [vmem:[%s0 + $0xec] sm:$0xf]
  %v74 = vld [vmem:[%s0 + $0xf0] sm:$0xf]
  %v75 = vld [vmem:[%s0 + $0xf4] sm:$0xf]
  %v76 = vld [vmem:[%s0 + $0xf8] sm:$0xf]
  %v77 = vld [vmem:[%s0 + $0xfc] sm:$0xf]
  %v78 = vld [vmem:[%s1] sm:$0xf]
  %v79 = vld [vmem:[%s1 + $0x4] sm:$0xf]
  %v80 = vld [vmem:[%s1 + $0x8] sm:$0xf]
  %v81 = vld [vmem:[%s1 + $0xc] sm:$0xf]
  %v82 = vld [vmem:[%s1 + $0x10] sm:$0xf]
  %v83 = vld [vmem:[%s1 + $0x14] sm:$0xf]
  %v84 = vld [vmem:[%s1 + $0x18] sm:$0xf]
  %v85 = vld [vmem:[%s1 + $0x1c] sm:$0xf]
  %v86 = vld [vmem:[%s1 + $0x20] sm:$0xf]
  %v87 = vld [vmem:[%s1 + $0x24] sm:$0xf]
  %v88 = vld [vmem:[%s1 + $0x28] sm:$0xf]
  %v89 = vld [vmem:[%s1 + $0x2c] sm:$0xf]
  %v90 = vld [vmem:[%s1 + $0x30] sm:$0xf]
  %v91 = vld [vmem:[%s1 + $0x34] sm:$0xf]
  %v92 = vld [vmem:[%s1 + $0x38] sm:$0xf]
  %v93 = vld [vmem:[%s1 + $0x3c] sm:$0xf]
  %v158 = vunpack.c.l.b16 %v14
  %v159 = vunpack.c.l.b16 %v15
  %v160 = vunpack.c.l.b16 %v16
  %v161 = vunpack.c.l.b16 %v17
  %v162 = vunpack.c.l.b16 %v18
  %v163 = vunpack.c.l.b16 %v19
  %v164 = vunpack.c.l.b16 %v20
  %v165 = vunpack.c.l.b16 %v21
  %v166 = vunpack.c.l.b16 %v22
  %v167 = vunpack.c.l.b16 %v23
  %v168 = vunpack.c.l.b16 %v24
  %v169 = vunpack.c.l.b16 %v25
  %v170 = vunpack.c.l.b16 %v26
  %v171 = vunpack.c.l.b16 %v27
  %v172 = vunpack.c.l.b16 %v28
  %v173 = vunpack.c.l.b16 %v29
  %v174 = vunpack.c.l.b16 %v30
  %v175 = vunpack.c.l.b16 %v31
  %v176 = vunpack.c.l.b16 %v32
  %v177 = vunpack.c.l.b16 %v33
  %v178 = vunpack.c.l.b16 %v34
  %v179 = vunpack.c.l.b16 %v35
  %v180 = vunpack.c.l.b16 %v36
  %v181 = vunpack.c.l.b16 %v37
  %v182 = vunpack.c.l.b16 %v38
  %v183 = vunpack.c.l.b16 %v39
  %v184 = vunpack.c.l.b16 %v40
  %v185 = vunpack.c.l.b16 %v41
  %v186 = vunpack.c.l.b16 %v42
  %v187 = vunpack.c.l.b16 %v43
  %v188 = vunpack.c.l.b16 %v44
  %v189 = vunpack.c.l.b16 %v45
  %v190 = vunpack.c.l.b16 %v46
  %v191 = vunpack.c.l.b16 %v47
  %v192 = vunpack.c.l.b16 %v48
  %v193 = vunpack.c.l.b16 %v49
  %v194 = vunpack.c.l.b16 %v50
  %v195 = vunpack.c.l.b16 %v51
  %v196 = vunpack.c.l.b16 %v52
  %v197 = vunpack.c.l.b16 %v53
  %v198 = vunpack.c.l.b16 %v54
  %v199 = vunpack.c.l.b16 %v55
  %v200 = vunpack.c.l.b16 %v56
  %v201 = vunpack.c.l.b16 %v57
  %v202 = vunpack.c.l.b16 %v58
  %v203 = vunpack.c.l.b16 %v59
  %v204 = vunpack.c.l.b16 %v60
  %v205 = vunpack.c.l.b16 %v61
  %v206 = vunpack.c.l.b16 %v62
  %v207 = vunpack.c.l.b16 %v63
  %v208 = vunpack.c.l.b16 %v64
  %v209 = vunpack.c.l.b16 %v65
  %v210 = vunpack.c.l.b16 %v66
  %v211 = vunpack.c.l.b16 %v67
  %v212 = vunpack.c.l.b16 %v68
  %v213 = vunpack.c.l.b16 %v69
  %v214 = vunpack.c.l.b16 %v70
  %v215 = vunpack.c.l.b16 %v71
  %v216 = vunpack.c.l.b16 %v72
  %v217 = vunpack.c.l.b16 %v73
  %v218 = vunpack.c.l.b16 %v74
  %v219 = vunpack.c.l.b16 %v75
  %v220 = vunpack.c.l.b16 %v76
  %v221 = vunpack.c.l.b16 %v77
  %v222 = vpack.c.b16 %v159, %v158
  %v223 = vpack.c.b16 %v161, %v160
  %v224 = vpack.c.b16 %v163, %v162
  %v225 = vpack.c.b16 %v165, %v164
  %v226 = vpack.c.b16 %v167, %v166
  %v227 = vpack.c.b16 %v169, %v168
  %v228 = vpack.c.b16 %v171, %v170
  %v229 = vpack.c.b16 %v173, %v172
  %v230 = vpack.c.b16 %v175, %v174
  %v231 = vpack.c.b16 %v177, %v176
  %v232 = vpack.c.b16 %v179, %v178
  %v233 = vpack.c.b16 %v181, %v180
  %v234 = vpack.c.b16 %v183, %v182
  %v235 = vpack.c.b16 %v185, %v184
  %v236 = vpack.c.b16 %v187, %v186
  %v237 = vpack.c.b16 %v189, %v188
  %v238 = vpack.c.b16 %v191, %v190
  %v239 = vpack.c.b16 %v193, %v192
  %v240 = vpack.c.b16 %v195, %v194
  %v241 = vpack.c.b16 %v197, %v196
  %v242 = vpack.c.b16 %v199, %v198
  %v243 = vpack.c.b16 %v201, %v200
  %v244 = vpack.c.b16 %v203, %v202
  %v245 = vpack.c.b16 %v205, %v204
  %v246 = vpack.c.b16 %v207, %v206
  %v247 = vpack.c.b16 %v209, %v208
  %v248 = vpack.c.b16 %v211, %v210
  %v249 = vpack.c.b16 %v213, %v212
  %v250 = vpack.c.b16 %v215, %v214
  %v251 = vpack.c.b16 %v217, %v216
  %v252 = vpack.c.b16 %v219, %v218
  %v253 = vpack.c.b16 %v221, %v220
  %v302 = vunpack.c.l.b16 %v78
  %v303 = vunpack.c.l.b16 %v79
  %v304 = vunpack.c.l.b16 %v80
  %v305 = vunpack.c.l.b16 %v81
  %v306 = vunpack.c.l.b16 %v82
  %v307 = vunpack.c.l.b16 %v83
  %v308 = vunpack.c.l.b16 %v84
  %v309 = vunpack.c.l.b16 %v85
  %v310 = vunpack.c.l.b16 %v86
  %v311 = vunpack.c.l.b16 %v87
  %v312 = vunpack.c.l.b16 %v88
  %v313 = vunpack.c.l.b16 %v89
  %v314 = vunpack.c.l.b16 %v90
  %v315 = vunpack.c.l.b16 %v91
  %v316 = vunpack.c.l.b16 %v92
  %v317 = vunpack.c.l.b16 %v93
  %v318 = vpack.c.b16 %v303, %v302
  %v319 = vpack.c.b16 %v305, %v304
  %v320 = vpack.c.b16 %v307, %v306
  %v321 = vpack.c.b16 %v309, %v308
  %v322 = vpack.c.b16 %v311, %v310
  %v323 = vpack.c.b16 %v313, %v312
  %v324 = vpack.c.b16 %v315, %v314
  %v325 = vpack.c.b16 %v317, %v316
  %334 = vmatpush.bf16.msra.mxu0 %v325
  %335 = vmatpush.bf16.msra.mxu0 %v324
  %336 = vmatpush.bf16.msra.mxu0 %v323
  %337 = vmatpush.bf16.msra.mxu0 %v322
  %338 = vmatpush.bf16.msra.mxu0 %v321
  %339 = vmatpush.bf16.msra.mxu0 %v320
  %340 = vmatpush.bf16.msra.mxu0 %v319
  %341 = vmatpush.bf16.msra.mxu0 %v318
  %342 = vmatmul.bf16.gmra.mxu0 %v222
  %v343 = vpop.f32.mrf.mxu0
  %v344 = vadd.f32 0.0, %v343
  %v345 = vpop.f32.mrf.mxu0
  %v346 = vadd.f32 0.0, %v345
  %347 = vmatmul.bf16.gmra.mxu0 %v223
  %v348 = vpop.f32.mrf.mxu0
  %v349 = vadd.f32 0.0, %v348
  %v350 = vpop.f32.mrf.mxu0
  %v351 = vadd.f32 0.0, %v350
  %352 = vmatmul.bf16.gmra.mxu0 %v224
  %v353 = vpop.f32.mrf.mxu0
  %v354 = vadd.f32 0.0, %v353
  %v355 = vpop.f32.mrf.mxu0
  %v356 = vadd.f32 0.0, %v355
  %357 = vmatmul.bf16.gmra.mxu0 %v225
  %v358 = vpop.f32.mrf.mxu0
  %v359 = vadd.f32 0.0, %v358
  %v360 = vpop.f32.mrf.mxu0
  %v361 = vadd.f32 0.0, %v360
  %362 = vmatmul.bf16.gmra.mxu0 %v226
  %v363 = vpop.f32.mrf.mxu0
  %v364 = vadd.f32 0.0, %v363
  %v365 = vpop.f32.mrf.mxu0
  %v366 = vadd.f32 0.0, %v365
  %367 = vmatmul.bf16.gmra.mxu0 %v227
  %v368 = vpop.f32.mrf.mxu0
  %v369 = vadd.f32 0.0, %v368
  %v370 = vpop.f32.mrf.mxu0
  %v371 = vadd.f32 0.0, %v370
  %372 = vmatmul.bf16.gmra.mxu0 %v228
  %v373 = vpop.f32.mrf.mxu0
  %v374 = vadd.f32 0.0, %v373
  %v375 = vpop.f32.mrf.mxu0
  %v376 = vadd.f32 0.0, %v375
  %377 = vmatmul.bf16.gmra.mxu0 %v229
  %v378 = vpop.f32.mrf.mxu0
  %v379 = vadd.f32 0.0, %v378
  %v380 = vpop.f32.mrf.mxu0
  %v381 = vadd.f32 0.0, %v380
  %382 = vmatmul.bf16.gmra.mxu0 %v230
  %v383 = vpop.f32.mrf.mxu0
  %v384 = vadd.f32 0.0, %v383
  %v385 = vpop.f32.mrf.mxu0
  %v386 = vadd.f32 0.0, %v385
  %387 = vmatmul.bf16.gmra.mxu0 %v231
  %v388 = vpop.f32.mrf.mxu0
  %v389 = vadd.f32 0.0, %v388
  %v390 = vpop.f32.mrf.mxu0
  %v391 = vadd.f32 0.0, %v390
  %392 = vmatmul.bf16.gmra.mxu0 %v232
  %v393 = vpop.f32.mrf.mxu0
  %v394 = vadd.f32 0.0, %v393
  %v395 = vpop.f32.mrf.mxu0
  %v396 = vadd.f32 0.0, %v395
  %397 = vmatmul.bf16.gmra.mxu0 %v233
  %v398 = vpop.f32.mrf.mxu0
  %v399 = vadd.f32 0.0, %v398
  %v400 = vpop.f32.mrf.mxu0
  %v401 = vadd.f32 0.0, %v400
  %402 = vmatmul.bf16.gmra.mxu0 %v234
  %v403 = vpop.f32.mrf.mxu0
  %v404 = vadd.f32 0.0, %v403
  %v405 = vpop.f32.mrf.mxu0
  %v406 = vadd.f32 0.0, %v405
  %407 = vmatmul.bf16.gmra.mxu0 %v235
  %v408 = vpop.f32.mrf.mxu0
  %v409 = vadd.f32 0.0, %v408
  %v410 = vpop.f32.mrf.mxu0
  %v411 = vadd.f32 0.0, %v410
  %412 = vmatmul.bf16.gmra.mxu0 %v236
  %v413 = vpop.f32.mrf.mxu0
  %v414 = vadd.f32 0.0, %v413
  %v415 = vpop.f32.mrf.mxu0
  %v416 = vadd.f32 0.0, %v415
  %417 = vmatmul.bf16.gmra.mxu0 %v237
  %v418 = vpop.f32.mrf.mxu0
  %v419 = vadd.f32 0.0, %v418
  %v420 = vpop.f32.mrf.mxu0
  %v421 = vadd.f32 0.0, %v420
  %422 = vmatmul.bf16.gmra.mxu0 %v238
  %v423 = vpop.f32.mrf.mxu0
  %v424 = vadd.f32 0.0, %v423
  %v425 = vpop.f32.mrf.mxu0
  %v426 = vadd.f32 0.0, %v425
  %427 = vmatmul.bf16.gmra.mxu0 %v239
  %v428 = vpop.f32.mrf.mxu0
  %v429 = vadd.f32 0.0, %v428
  %v430 = vpop.f32.mrf.mxu0
  %v431 = vadd.f32 0.0, %v430
  %432 = vmatmul.bf16.gmra.mxu0 %v240
  %v433 = vpop.f32.mrf.mxu0
  %v434 = vadd.f32 0.0, %v433
  %v435 = vpop.f32.mrf.mxu0
  %v436 = vadd.f32 0.0, %v435
  %437 = vmatmul.bf16.gmra.mxu0 %v241
  %v438 = vpop.f32.mrf.mxu0
  %v439 = vadd.f32 0.0, %v438
  %v440 = vpop.f32.mrf.mxu0
  %v441 = vadd.f32 0.0, %v440
  %442 = vmatmul.bf16.gmra.mxu0 %v242
  %v443 = vpop.f32.mrf.mxu0
  %v444 = vadd.f32 0.0, %v443
  %v445 = vpop.f32.mrf.mxu0
  %v446 = vadd.f32 0.0, %v445
  %447 = vmatmul.bf16.gmra.mxu0 %v243
  %v448 = vpop.f32.mrf.mxu0
  %v449 = vadd.f32 0.0, %v448
  %v450 = vpop.f32.mrf.mxu0
  %v451 = vadd.f32 0.0, %v450
  %452 = vmatmul.bf16.gmra.mxu0 %v244
  %v453 = vpop.f32.mrf.mxu0
  %v454 = vadd.f32 0.0, %v453
  %v455 = vpop.f32.mrf.mxu0
  %v456 = vadd.f32 0.0, %v455
  %457 = vmatmul.bf16.gmra.mxu0 %v245
  %v458 = vpop.f32.mrf.mxu0
  %v459 = vadd.f32 0.0, %v458
  %v460 = vpop.f32.mrf.mxu0
  %v461 = vadd.f32 0.0, %v460
  %462 = vmatmul.bf16.gmra.mxu0 %v246
  %v463 = vpop.f32.mrf.mxu0
  %v464 = vadd.f32 0.0, %v463
  %v465 = vpop.f32.mrf.mxu0
  %v466 = vadd.f32 0.0, %v465
  %467 = vmatmul.bf16.gmra.mxu0 %v247
  %v468 = vpop.f32.mrf.mxu0
  %v469 = vadd.f32 0.0, %v468
  %v470 = vpop.f32.mrf.mxu0
  %v471 = vadd.f32 0.0, %v470
  %472 = vmatmul.bf16.gmra.mxu0 %v248
  %v473 = vpop.f32.mrf.mxu0
  %v474 = vadd.f32 0.0, %v473
  %v475 = vpop.f32.mrf.mxu0
  %v476 = vadd.f32 0.0, %v475
  %477 = vmatmul.bf16.gmra.mxu0 %v249
  %v478 = vpop.f32.mrf.mxu0
  %v479 = vadd.f32 0.0, %v478
  %v480 = vpop.f32.mrf.mxu0
  %v481 = vadd.f32 0.0, %v480
  %482 = vmatmul.bf16.gmra.mxu0 %v250
  %v483 = vpop.f32.mrf.mxu0
  %v484 = vadd.f32 0.0, %v483
  %v485 = vpop.f32.mrf.mxu0
  %v486 = vadd.f32 0.0, %v485
  %487 = vmatmul.bf16.gmra.mxu0 %v251
  %v488 = vpop.f32.mrf.mxu0
  %v489 = vadd.f32 0.0, %v488
  %v490 = vpop.f32.mrf.mxu0
  %v491 = vadd.f32 0.0, %v490
  %492 = vmatmul.bf16.gmra.mxu0 %v252
  %v493 = vpop.f32.mrf.mxu0
  %v494 = vadd.f32 0.0, %v493
  %v495 = vpop.f32.mrf.mxu0
  %v496 = vadd.f32 0.0, %v495
  %497 = vmatmul.bf16.gmra.mxu0 %v253
  %v498 = vpop.f32.mrf.mxu0
  %v499 = vadd.f32 0.0, %v498
  %v500 = vpop.f32.mrf.mxu0
  %v501 = vadd.f32 0.0, %v500
  %502 = vdwg.mxu0
  %v503 = vld [vmem:[%s2] sm:$0x1]
  %v504 = vperm.slane %v503, 0
  %v505 = vmul.f32 %v344, %v504
  %v506 = vmul.f32 %v346, %v504
  %v507 = vmul.f32 %v349, %v504
  %v508 = vmul.f32 %v351, %v504
  %v509 = vmul.f32 %v354, %v504
  %v510 = vmul.f32 %v356, %v504
  %v511 = vmul.f32 %v359, %v504
  %v512 = vmul.f32 %v361, %v504
  %v513 = vmul.f32 %v364, %v504
  %v514 = vmul.f32 %v366, %v504
  %v515 = vmul.f32 %v369, %v504
  %v516 = vmul.f32 %v371, %v504
  %v517 = vmul.f32 %v374, %v504
  %v518 = vmul.f32 %v376, %v504
  %v519 = vmul.f32 %v379, %v504
  %v520 = vmul.f32 %v381, %v504
  %v521 = vmul.f32 %v384, %v504
  %v522 = vmul.f32 %v386, %v504
  %v523 = vmul.f32 %v389, %v504
  %v524 = vmul.f32 %v391, %v504
  %v525 = vmul.f32 %v394, %v504
  %v526 = vmul.f32 %v396, %v504
  %v527 = vmul.f32 %v399, %v504
  %v528 = vmul.f32 %v401, %v504
  %v529 = vmul.f32 %v404, %v504
  %v530 = vmul.f32 %v406, %v504
  %v531 = vmul.f32 %v409, %v504
  %v532 = vmul.f32 %v411, %v504
  %v533 = vmul.f32 %v414, %v504
  %v534 = vmul.f32 %v416, %v504
  %v535 = vmul.f32 %v419, %v504
  %v536 = vmul.f32 %v421, %v504
  %v537 = vmul.f32 %v424, %v504
  %v538 = vmul.f32 %v426, %v504
  %v539 = vmul.f32 %v429, %v504
  %v540 = vmul.f32 %v431, %v504
  %v541 = vmul.f32 %v434, %v504
  %v542 = vmul.f32 %v436, %v504
  %v543 = vmul.f32 %v439, %v504
  %v544 = vmul.f32 %v441, %v504
  %v545 = vmul.f32 %v444, %v504
  %v546 = vmul.f32 %v446, %v504
  %v547 = vmul.f32 %v449, %v504
  %v548 = vmul.f32 %v451, %v504
  %v549 = vmul.f32 %v454, %v504
  %v550 = vmul.f32 %v456, %v504
  %v551 = vmul.f32 %v459, %v504
  %v552 = vmul.f32 %v461, %v504
  %v553 = vmul.f32 %v464, %v504
  %v554 = vmul.f32 %v466, %v504
  %v555 = vmul.f32 %v469, %v504
  %v556 = vmul.f32 %v471, %v504
  %v557 = vmul.f32 %v474, %v504
  %v558 = vmul.f32 %v476, %v504
  %v559 = vmul.f32 %v479, %v504
  %v560 = vmul.f32 %v481, %v504
  %v561 = vmul.f32 %v484, %v504
  %v562 = vmul.f32 %v486, %v504
  %v563 = vmul.f32 %v489, %v504
  %v564 = vmul.f32 %v491, %v504
  %v565 = vmul.f32 %v494, %v504
  %v566 = vmul.f32 %v496, %v504
  %v567 = vmul.f32 %v499, %v504
  %v568 = vmul.f32 %v501, %v504
  %v569 = vld [vmem:[%s2 + $0x1] sm:$0x1]
  %v570 = vperm.slane %v569, 0
  %v571 = vadd.f32 %v505, %v570
  %v572 = vadd.f32 %v506, %v570
  %v573 = vadd.f32 %v507, %v570
  %v574 = vadd.f32 %v508, %v570
  %v575 = vadd.f32 %v509, %v570
  %v576 = vadd.f32 %v510, %v570
  %v577 = vadd.f32 %v511, %v570
  %v578 = vadd.f32 %v512, %v570
  %v579 = vadd.f32 %v513, %v570
  %v580 = vadd.f32 %v514, %v570
  %v581 = vadd.f32 %v515, %v570
  %v582 = vadd.f32 %v516, %v570
  %v583 = vadd.f32 %v517, %v570
  %v584 = vadd.f32 %v518, %v570
  %v585 = vadd.f32 %v519, %v570
  %v586 = vadd.f32 %v520, %v570
  %v587 = vadd.f32 %v521, %v570
  %v588 = vadd.f32 %v522, %v570
  %v589 = vadd.f32 %v523, %v570
  %v590 = vadd.f32 %v524, %v570
  %v591 = vadd.f32 %v525, %v570
  %v592 = vadd.f32 %v526, %v570
  %v593 = vadd.f32 %v527, %v570
  %v594 = vadd.f32 %v528, %v570
  %v595 = vadd.f32 %v529, %v570
  %v596 = vadd.f32 %v530, %v570
  %v597 = vadd.f32 %v531, %v570
  %v598 = vadd.f32 %v532, %v570
  %v599 = vadd.f32 %v533, %v570
  %v600 = vadd.f32 %v534, %v570
  %v601 = vadd.f32 %v535, %v570
  %v602 = vadd.f32 %v536, %v570
  %v603 = vadd.f32 %v537, %v570
  %v604 = vadd.f32 %v538, %v570
  %v605 = vadd.f32 %v539, %v570
  %v606 = vadd.f32 %v540, %v570
  %v607 = vadd.f32 %v541, %v570
  %v608 = vadd.f32 %v542, %v570
  %v609 = vadd.f32 %v543, %v570
  %v610 = vadd.f32 %v544, %v570
  %v611 = vadd.f32 %v545, %v570
  %v612 = vadd.f32 %v546, %v570
  %v613 = vadd.f32 %v547, %v570
  %v614 = vadd.f32 %v548, %v570
  %v615 = vadd.f32 %v549, %v570
  %v616 = vadd.f32 %v550, %v570
  %v617 = vadd.f32 %v551, %v570
  %v618 = vadd.f32 %v552, %v570
  %v619 = vadd.f32 %v553, %v570
  %v620 = vadd.f32 %v554, %v570
  %v621 = vadd.f32 %v555, %v570
  %v622 = vadd.f32 %v556, %v570
  %v623 = vadd.f32 %v557, %v570
  %v624 = vadd.f32 %v558, %v570
  %v625 = vadd.f32 %v559, %v570
  %v626 = vadd.f32 %v560, %v570
  %v627 = vadd.f32 %v561, %v570
  %v628 = vadd.f32 %v562, %v570
  %v629 = vadd.f32 %v563, %v570
  %v630 = vadd.f32 %v564, %v570
  %v631 = vadd.f32 %v565, %v570
  %v632 = vadd.f32 %v566, %v570
  %v633 = vadd.f32 %v567, %v570
  %v634 = vadd.f32 %v568, %v570
  %v635 = vmul.f32 %v571, 0.1
  %v636 = vmul.f32 %v572, 0.1
  %v637 = vmul.f32 %v573, 0.1
  %v638 = vmul.f32 %v574, 0.1
  %v639 = vmul.f32 %v575, 0.1
  %v640 = vmul.f32 %v576, 0.1
  %v641 = vmul.f32 %v577, 0.1
  %v642 = vmul.f32 %v578, 0.1
  %v643 = vmul.f32 %v579, 0.1
  %v644 = vmul.f32 %v580, 0.1
  %v645 = vmul.f32 %v581, 0.1
  %v646 = vmul.f32 %v582, 0.1
  %v647 = vmul.f32 %v583, 0.1
  %v648 = vmul.f32 %v584, 0.1
  %v649 = vmul.f32 %v585, 0.1
  %v650 = vmul.f32 %v586, 0.1
  %v651 = vmul.f32 %v587, 0.1
  %v652 = vmul.f32 %v588, 0.1
  %v653 = vmul.f32 %v589, 0.1
  %v654 = vmul.f32 %v590, 0.1
  %v655 = vmul.f32 %v591, 0.1
  %v656 = vmul.f32 %v592, 0.1
  %v657 = vmul.f32 %v593, 0.1
  %v658 = vmul.f32 %v594, 0.1
  %v659 = vmul.f32 %v595, 0.1
  %v660 = vmul.f32 %v596, 0.1
  %v661 = vmul.f32 %v597, 0.1
  %v662 = vmul.f32 %v598, 0.1
  %v663 = vmul.f32 %v599, 0.1
  %v664 = vmul.f32 %v600, 0.1
  %v665 = vmul.f32 %v601, 0.1
  %v666 = vmul.f32 %v602, 0.1
  %v667 = vmul.f32 %v603, 0.1
  %v668 = vmul.f32 %v604, 0.1
  %v669 = vmul.f32 %v605, 0.1
  %v670 = vmul.f32 %v606, 0.1
  %v671 = vmul.f32 %v607, 0.1
  %v672 = vmul.f32 %v608, 0.1
  %v673 = vmul.f32 %v609, 0.1
  %v674 = vmul.f32 %v610, 0.1
  %v675 = vmul.f32 %v611, 0.1
  %v676 = vmul.f32 %v612, 0.1
  %v677 = vmul.f32 %v613, 0.1
  %v678 = vmul.f32 %v614, 0.1
  %v679 = vmul.f32 %v615, 0.1
  %v680 = vmul.f32 %v616, 0.1
  %v681 = vmul.f32 %v617, 0.1
  %v682 = vmul.f32 %v618, 0.1
  %v683 = vmul.f32 %v619, 0.1
  %v684 = vmul.f32 %v620, 0.1
  %v685 = vmul.f32 %v621, 0.1
  %v686 = vmul.f32 %v622, 0.1
  %v687 = vmul.f32 %v623, 0.1
  %v688 = vmul.f32 %v624, 0.1
  %v689 = vmul.f32 %v625, 0.1
  %v690 = vmul.f32 %v626, 0.1
  %v691 = vmul.f32 %v627, 0.1
  %v692 = vmul.f32 %v628, 0.1
  %v693 = vmul.f32 %v629, 0.1
  %v694 = vmul.f32 %v630, 0.1
  %v695 = vmul.f32 %v631, 0.1
  %v696 = vmul.f32 %v632, 0.1
  %v697 = vmul.f32 %v633, 0.1
  %v698 = vmul.f32 %v634, 0.1
  %v699 = vmax.f32 %v571, %v635
  %v700 = vmax.f32 %v572, %v636
  %v701 = vmax.f32 %v573, %v637
  %v702 = vmax.f32 %v574, %v638
  %v703 = vmax.f32 %v575, %v639
  %v704 = vmax.f32 %v576, %v640
  %v705 = vmax.f32 %v577, %v641
  %v706 = vmax.f32 %v578, %v642
  %v707 = vmax.f32 %v579, %v643
  %v708 = vmax.f32 %v580, %v644
  %v709 = vmax.f32 %v581, %v645
  %v710 = vmax.f32 %v582, %v646
  %v711 = vmax.f32 %v583, %v647
  %v712 = vmax.f32 %v584, %v648
  %v713 = vmax.f32 %v585, %v649
  %v714 = vmax.f32 %v586, %v650
  %v715 = vmax.f32 %v587, %v651
  %v716 = vmax.f32 %v588, %v652
  %v717 = vmax.f32 %v589, %v653
  %v718 = vmax.f32 %v590, %v654
  %v719 = vmax.f32 %v591, %v655
  %v720 = vmax.f32 %v592, %v656
  %v721 = vmax.f32 %v593, %v657
  %v722 = vmax.f32 %v594, %v658
  %v723 = vmax.f32 %v595, %v659
  %v724 = vmax.f32 %v596, %v660
  %v725 = vmax.f32 %v597, %v661
  %v726 = vmax.f32 %v598, %v662
  %v727 = vmax.f32 %v599, %v663
  %v728 = vmax.f32 %v600, %v664
  %v729 = vmax.f32 %v601, %v665
  %v730 = vmax.f32 %v602, %v666
  %v731 = vmax.f32 %v603, %v667
  %v732 = vmax.f32 %v604, %v668
  %v733 = vmax.f32 %v605, %v669
  %v734 = vmax.f32 %v606, %v670
  %v735 = vmax.f32 %v607, %v671
  %v736 = vmax.f32 %v608, %v672
  %v737 = vmax.f32 %v609, %v673
  %v738 = vmax.f32 %v610, %v674
  %v739 = vmax.f32 %v611, %v675
  %v740 = vmax.f32 %v612, %v676
  %v741 = vmax.f32 %v613, %v677
  %v742 = vmax.f32 %v614, %v678
  %v743 = vmax.f32 %v615, %v679
  %v744 = vmax.f32 %v616, %v680
  %v745 = vmax.f32 %v617, %v681
  %v746 = vmax.f32 %v618, %v682
  %v747 = vmax.f32 %v619, %v683
  %v748 = vmax.f32 %v620, %v684
  %v749 = vmax.f32 %v621, %v685
  %v750 = vmax.f32 %v622, %v686
  %v751 = vmax.f32 %v623, %v687
  %v752 = vmax.f32 %v624, %v688
  %v753 = vmax.f32 %v625, %v689
  %v754 = vmax.f32 %v626, %v690
  %v755 = vmax.f32 %v627, %v691
  %v756 = vmax.f32 %v628, %v692
  %v757 = vmax.f32 %v629, %v693
  %v758 = vmax.f32 %v630, %v694
  %v759 = vmax.f32 %v631, %v695
  %v760 = vmax.f32 %v632, %v696
  %v761 = vmax.f32 %v633, %v697
  %v762 = vmax.f32 %v634, %v698
  %763 = vst [vmem:[%s3] sm:$0xff] %v699
  %764 = vst [vmem:[%s3 + $0x8] sm:$0xff] %v700
  %765 = vst [vmem:[%s3 + $0x10] sm:$0xff] %v701
  %766 = vst [vmem:[%s3 + $0x18] sm:$0xff] %v702
  %767 = vst [vmem:[%s3 + $0x20] sm:$0xff] %v703
  %768 = vst [vmem:[%s3 + $0x28] sm:$0xff] %v704
  %769 = vst [vmem:[%s3 + $0x30] sm:$0xff] %v705
  %770 = vst [vmem:[%s3 + $0x38] sm:$0xff] %v706
  %771 = vst [vmem:[%s3 + $0x40] sm:$0xff] %v707
  %772 = vst [vmem:[%s3 + $0x48] sm:$0xff] %v708
  %773 = vst [vmem:[%s3 + $0x50] sm:$0xff] %v709
  %774 = vst [vmem:[%s3 + $0x58] sm:$0xff] %v710
  %775 = vst [vmem:[%s3 + $0x60] sm:$0xff] %v711
  %776 = vst [vmem:[%s3 + $0x68] sm:$0xff] %v712
  %777 = vst [vmem:[%s3 + $0x70] sm:$0xff] %v713
  %778 = vst [vmem:[%s3 + $0x78] sm:$0xff] %v714
  %779 = vst [vmem:[%s3 + $0x80] sm:$0xff] %v715
  %780 = vst [vmem:[%s3 + $0x88] sm:$0xff] %v716
  %781 = vst [vmem:[%s3 + $0x90] sm:$0xff] %v717
  %782 = vst [vmem:[%s3 + $0x98] sm:$0xff] %v718
  %783 = vst [vmem:[%s3 + $0xa0] sm:$0xff] %v719
  %784 = vst [vmem:[%s3 + $0xa8] sm:$0xff] %v720
  %785 = vst [vmem:[%s3 + $0xb0] sm:$0xff] %v721
  %786 = vst [vmem:[%s3 + $0xb8] sm:$0xff] %v722
  %787 = vst [vmem:[%s3 + $0xc0] sm:$0xff] %v723
  %788 = vst [vmem:[%s3 + $0xc8] sm:$0xff] %v724
  %789 = vst [vmem:[%s3 + $0xd0] sm:$0xff] %v725
  %790 = vst [vmem:[%s3 + $0xd8] sm:$0xff] %v726
  %791 = vst [vmem:[%s3 + $0xe0] sm:$0xff] %v727
  %792 = vst [vmem:[%s3 + $0xe8] sm:$0xff] %v728
  %793 = vst [vmem:[%s3 + $0xf0] sm:$0xff] %v729
  %794 = vst [vmem:[%s3 + $0xf8] sm:$0xff] %v730
  %795 = vst [vmem:[%s3 + $0x100] sm:$0xff] %v731
  %796 = vst [vmem:[%s3 + $0x108] sm:$0xff] %v732
  %797 = vst [vmem:[%s3 + $0x110] sm:$0xff] %v733
  %798 = vst [vmem:[%s3 + $0x118] sm:$0xff] %v734
  %799 = vst [vmem:[%s3 + $0x120] sm:$0xff] %v735
  %800 = vst [vmem:[%s3 + $0x128] sm:$0xff] %v736
  %801 = vst [vmem:[%s3 + $0x130] sm:$0xff] %v737
  %802 = vst [vmem:[%s3 + $0x138] sm:$0xff] %v738
  %803 = vst [vmem:[%s3 + $0x140] sm:$0xff] %v739
  %804 = vst [vmem:[%s3 + $0x148] sm:$0xff] %v740
  %805 = vst [vmem:[%s3 + $0x150] sm:$0xff] %v741
  %806 = vst [vmem:[%s3 + $0x158] sm:$0xff] %v742
  %807 = vst [vmem:[%s3 + $0x160] sm:$0xff] %v743
  %808 = vst [vmem:[%s3 + $0x168] sm:$0xff] %v744
  %809 = vst [vmem:[%s3 + $0x170] sm:$0xff] %v745
  %810 = vst [vmem:[%s3 + $0x178] sm:$0xff] %v746
  %811 = vst [vmem:[%s3 + $0x180] sm:$0xff] %v747
  %812 = vst [vmem:[%s3 + $0x188] sm:$0xff] %v748
  %813 = vst [vmem:[%s3 + $0x190] sm:$0xff] %v749
  %814 = vst [vmem:[%s3 + $0x198] sm:$0xff] %v750
  %815 = vst [vmem:[%s3 + $0x1a0] sm:$0xff] %v751
  %816 = vst [vmem:[%s3 + $0x1a8] sm:$0xff] %v752
  %817 = vst [vmem:[%s3 + $0x1b0] sm:$0xff] %v753
  %818 = vst [vmem:[%s3 + $0x1b8] sm:$0xff] %v754
  %819 = vst [vmem:[%s3 + $0x1c0] sm:$0xff] %v755
  %820 = vst [vmem:[%s3 + $0x1c8] sm:$0xff] %v756
  %821 = vst [vmem:[%s3 + $0x1d0] sm:$0xff] %v757
  %822 = vst [vmem:[%s3 + $0x1d8] sm:$0xff] %v758
  %823 = vst [vmem:[%s3 + $0x1e0] sm:$0xff] %v759
  %824 = vst [vmem:[%s3 + $0x1e8] sm:$0xff] %v760
  %825 = vst [vmem:[%s3 + $0x1f0] sm:$0xff] %v761
  %826 = vst [vmem:[%s3 + $0x1f8] sm:$0xff] %v762
  // Predicated region
  $region14: #{cnn_block.3} parent=0 // pred_check
    _
  $region15: #{cnn_block.3} parent=0 // pred_check_branch
    %828 = sbr.rel (0) target = $region17
  $region16: #{cnn_block.3} parent=0 // pred_region
    _
  $region17: #{cnn_block.3} parent=0 // pred_fallthru
    _
  // Predicated region
  $region18: #{cnn_block.3} parent=0 // pred_check
    _
  $region19: #{cnn_block.3} parent=0 // pred_check_branch
    %830 = sbr.rel (0) target = $region21
  $region20: #{cnn_block.3} parent=0 // pred_region
    _
  $region21: #{cnn_block.3} parent=0 // pred_fallthru
    _

</llo_original>
